<compile_context>
chip_gen: v7x
topology: tpu7x:2x2x1
jax: 0.10.0
libtpu: 0.0.40
codegen_flags: <defaults>
</compile_context>

<pallas_src>
import jax
import jax.numpy as jnp
from jax.experimental import pallas as pl
from jax.experimental.pallas import tpu as pltpu

_K = 3       # kernel size of every Conv1d in the module
_PAD = 1     # padding of every Conv1d in the module

# (c_in, c_out, stride, silu_after)
_LAYER_CFG = [
    (2,   16,  2, True),
    (16,  16,  1, True),
    (16,  128, 2, True),
    (128, 128, 1, True),
    (128, 256, 2, False),
]
_N_LAYERS = len(_LAYER_CFG)


def _out_len(l_in, stride):
    return (l_in + 2 * _PAD - _K) // stride + 1


def _round_up(x, m):
    return -(-x // m) * m


def _padded_bytes(shape, dtype):
    """VMEM footprint with (sublane, 128-lane) padding, not logical bytes."""
    itemsize = jnp.dtype(dtype).itemsize
    sub_mult = 8 * (4 // itemsize)          # 8 for f32, 16 for bf16
    if len(shape) < 2:
        return _round_up(max(shape[0] if shape else 1, 1), 128) * itemsize
    lead = 1
    for d in shape[:-2]:
        lead *= d
    sub = _round_up(shape[-2], sub_mult)
    lane = _round_up(shape[-1], 128)
    return lead * sub * lane * itemsize


def _silu(x):
    # Single-transcendental SiLU: x*sigmoid(x) == x*(0.5*tanh(0.5*x)+0.5).
    # One EUP push per element (vs exp + reciprocal); f32 so it is also safe
    # on v5e (no bf16 EUP/VPU).
    # TODO(synk): run the tanh in bf16 on v6e/v7x for extra EUP headroom.
    return x * (jnp.tanh(x * 0.5) * 0.5 + 0.5)


def _conv_silu(in_ref, w_ref, b_ref, l_out, stride, apply_silu, split_deep):
    """One conv(+SiLU) layer for the current batch tile, fully in VMEM.

    in_ref : (B, L_in + 2, C_in)  zero-padded activations (pad rows are 0)
    w_ref  : (K*C_in, C_out)      tap-major weights (bf16 or f32)
    b_ref  : (1, C_out)           bias (f32)
    returns: (B*l_out, C_out)     f32
    """
    b_tile = in_ref.shape[0]
    c_in = in_ref.shape[2]
    if stride == 1:
        taps = [in_ref[:, pl.ds(k, l_out), :] for k in range(_K)]
    else:
        taps = [in_ref[:, pl.ds(k, l_out, stride=stride), :] for k in range(_K)]
    # Merge the batch tile into the matmul M dimension.  (Free when l_out is a
    # multiple of 8, which holds for typical audio lengths.)
    taps = [t.reshape(b_tile * l_out, c_in) for t in taps]

    if split_deep:
        # v5e: MXU contraction depth is 128, so a 384-deep contraction is 3
        # passes anyway; skip the (M, K*C_in) concat materialisation.
        acc = jnp.zeros((b_tile * l_out, w_ref.shape[1]), jnp.float32)
        for k in range(_K):
            acc = acc + jnp.dot(taps[k], w_ref[k * c_in:(k + 1) * c_in, :],
                                preferred_element_type=jnp.float32)
    else:
        # v6e/v7x: single deep-contraction matmul (256-deep MXU).
        xcol = jnp.concatenate(taps, axis=-1)            # (B*l_out, K*C_in)
        acc = jnp.dot(xcol, w_ref[...], preferred_element_type=jnp.float32)

    acc = acc + b_ref[...]                               # f32 epilogue
    if apply_silu:
        acc = _silu(acc)
    return acc


def _make_kernel(split_deep):
    def kernel(x_ref, w1, b1, w2, b2, w3, b3, w4, b4, w5, b5,
               o_ref, h1, h2, h3, h4):
        """All five conv+SiLU layers for one batch tile (grid axis 0)."""
        w_refs = (w1, w2, w3, w4, w5)
        b_refs = (b1, b2, b3, b4, b5)
        scratch = (h1, h2, h3, h4)
        b_tile = x_ref.shape[0]

        in_ref = x_ref                                   # (B, L0+2, 2)
        for li, (c_in, c_out, stride, act) in enumerate(_LAYER_CFG):
            last = li == _N_LAYERS - 1
            l_in = in_ref.shape[1] - 2 * _PAD
            l_out = _out_len(l_in, stride)
            acc = _conv_silu(in_ref, w_refs[li], b_refs[li], l_out, stride,
                             act, split_deep and c_in >= 128)
            if last:
                # Store directly in PyTorch NCL layout: per-batch
                # (l_out, 256) -> (256, l_out) XLU transpose rides a free
                # slot and removes the wrapper-side HBM transpose pass.
                for b in range(b_tile):
                    o_ref[b, :, :] = (
                        acc[b * l_out:(b + 1) * l_out, :].T.astype(o_ref.dtype))
            else:
                buf = scratch[li]                        # (B, l_out + 2, c_out)
                # Pad-row zeroing is NOT gated on program_id == 0: scratch is
                # per-core and the batch axis is "parallel", so a second core
                # would never execute step 0.  Cost is 2*B single-row stores.
                zero = jnp.zeros((b_tile, 1, c_out), buf.dtype)
                buf[:, 0:1, :] = zero
                buf[:, l_out + 1:l_out + 2, :] = zero
                buf[:, 1:l_out + 1, :] = acc.reshape(
                    b_tile, l_out, c_out).astype(buf.dtype)
                in_ref = buf
    return kernel


def init_params(key):
    params = []
    for (c_in, c_out, _stride, _act) in _LAYER_CFG:
        key, kw, kb = jax.random.split(key, 3)
        w = jax.random.normal(kw, (c_out, c_in, _K), jnp.float32) * 0.1
        b = jax.random.normal(kb, (c_out,), jnp.float32) * 0.1
        params.append((w, b))
    return params


def dynamics_extractor_full_stereo(x, params, *, compute_dtype=jnp.bfloat16,
                                   out_dtype=jnp.float32,
                                   max_batch_tile=8,
                                   split_deep_contraction=False):
    """x: (N, 2, L) f32 -> (N, 256, ~L/8) (PyTorch NCL semantics)."""
    N, c0, L0 = x.shape
    assert c0 == _LAYER_CFG[0][0]

    lens = []
    l = L0
    for (_ci, _co, stride, _act) in _LAYER_CFG:
        l = _out_len(l, stride)
        lens.append(l)
    l_final, c_final = lens[-1], _LAYER_CFG[-1][1]

    # Batch tile: amortise per-grid-step overhead and raise MXU row occupancy.
    b_tile = 1
    for cand in range(min(max_batch_tile, N), 0, -1):
        if N % cand == 0:
            b_tile = cand
            break

    # (N, C, L) -> (N, L, C); zero-pad L by 1 each side; cast the MXU operand.
    xp = jnp.pad(jnp.transpose(x, (0, 2, 1)),
                 ((0, 0), (_PAD, _PAD), (0, 0))).astype(compute_dtype)

    inputs = [xp]
    in_specs = [pl.BlockSpec((b_tile, L0 + 2 * _PAD, c0), lambda n: (n, 0, 0))]
    w_bytes = 0
    for (w, b), (c_in, c_out, _stride, _act) in zip(params, _LAYER_CFG):
        # (C_out, C_in, K) -> (K*C_in, C_out), tap-major to match im2col order.
        wm = jnp.transpose(w, (2, 1, 0)).reshape(_K * c_in, c_out)
        inputs += [wm.astype(compute_dtype),
                   b.reshape(1, c_out).astype(jnp.float32)]
        in_specs += [pl.BlockSpec((_K * c_in, c_out), lambda n: (0, 0)),
                     pl.BlockSpec((1, c_out), lambda n: (0, 0))]
        w_bytes += (wm.size * jnp.dtype(compute_dtype).itemsize + c_out * 4)

    scratch_shapes = [
        pltpu.VMEM((b_tile, lens[i] + 2 * _PAD, _LAYER_CFG[i][1]), compute_dtype)
        for i in range(_N_LAYERS - 1)
    ]

    # ---- VMEM budget from lane/sublane-padded bytes -------------------------
    vmem_need = 2 * _padded_bytes((b_tile, L0 + 2 * _PAD, c0), compute_dtype)
    vmem_need += 2 * _padded_bytes((b_tile, c_final, l_final), out_dtype)
    for (c_in, c_out, _s, _a) in _LAYER_CFG:
        vmem_need += 2 * (_padded_bytes((_K * c_in, c_out), compute_dtype)
                          + _padded_bytes((1, c_out), jnp.float32))
    for i in range(_N_LAYERS - 1):
        vmem_need += _padded_bytes((b_tile, lens[i] + 2 * _PAD,
                                    _LAYER_CFG[i][1]), compute_dtype)
    # Largest in-flight temporaries (im2col + f32 accumulator / transpose).
    tmp, l_in = 0, L0
    for (c_in, c_out, stride, _a) in _LAYER_CFG:
        l_o = _out_len(l_in, stride)
        tmp = max(tmp,
                  _padded_bytes((b_tile * l_o, _K * c_in), compute_dtype)
                  + 2 * _padded_bytes((b_tile * l_o, c_out), jnp.float32))
        l_in = l_o
    vmem_need += 2 * tmp
    vmem_limit = int(min(max(vmem_need + (8 << 20), 32 << 20), 128 << 20))

    # ---- Cost estimate for the XLA scheduler --------------------------------
    flops, trans, l_in = 0, 0, L0
    for (c_in, c_out, stride, act) in _LAYER_CFG:
        l_o = _out_len(l_in, stride)
        flops += 2 * N * l_o * _K * c_in * c_out
        if act:
            trans += N * l_o * c_out
        l_in = l_o
    bytes_acc = (xp.size * jnp.dtype(compute_dtype).itemsize
                 + N * c_final * l_final * jnp.dtype(out_dtype).itemsize
                 + w_bytes)
    cost = pl.CostEstimate(flops=int(flops), transcendentals=int(trans),
                           bytes_accessed=int(bytes_acc))

    # TODO(synk): for very long sequences add an L-tile grid axis with
    # per-layer halos (an out tile of T rows needs ~8*T+4 input rows) so the
    # VMEM-resident intermediates stay bounded on v7x's 64 MiB VMEM, and fold
    # the C=2/16 early activations into >=128 lanes (e.g. 8 timesteps x 16 ch)
    # so lane padding stops inflating their footprint 8-64x.
    out = pl.pallas_call(
        _make_kernel(split_deep_contraction),
        out_shape=jax.ShapeDtypeStruct((N, c_final, l_final), out_dtype),
        grid_spec=pltpu.PrefetchScalarGridSpec(
            num_scalar_prefetch=0,
            grid=(N // b_tile,),
            in_specs=in_specs,
            out_specs=pl.BlockSpec((b_tile, c_final, l_final),
                                   lambda n: (n, 0, 0)),
            scratch_shapes=scratch_shapes,
        ),
        compiler_params=pltpu.CompilerParams(
            dimension_semantics=("parallel",),
            vmem_limit_bytes=vmem_limit),
        cost_estimate=cost,
    )(*inputs)

    return out          # already in PyTorch NCL layout (N, 256, L/8)


# ---- Pure-JAX reference for the correctness check ---------------------------

def _conv1d_ref(x, w, b, stride):
    out = jax.lax.conv_general_dilated(
        x, w, window_strides=(stride,), padding=[(_PAD, _PAD)],
        dimension_numbers=("NCH", "OIH", "NCH"),
        precision=jax.lax.Precision.HIGHEST)
    return out + b[None, :, None]


def _ref_forward(x, params):
    for (w, b), (_ci, _co, stride, act) in zip(params, _LAYER_CFG):
        x = _conv1d_ref(x, w, b, stride)
        if act:
            x = x * jax.nn.sigmoid(x)
    return x


if __name__ == "__main__":
    key = jax.random.PRNGKey(0)
    key, kx = jax.random.split(key)
    # stereo input: batch=2, channels=2, sequence length=64
    x = jax.random.normal(kx, (2, 2, 64), jnp.float32)
    params = init_params(key)

    ref = jax.block_until_ready(_ref_forward(x, params))

    # f32-operand path: tight check of stride/halo/index/transpose math.
    out_f32 = jax.block_until_ready(
        dynamics_extractor_full_stereo(x, params, compute_dtype=jnp.float32))
    assert out_f32.shape == ref.shape == (2, 256, 8), (out_f32.shape, ref.shape)
    assert jnp.allclose(out_f32, ref, atol=1e-2, rtol=1e-2), float(
        jnp.max(jnp.abs(out_f32 - ref)))

    # v5e-style split-contraction path (3 accumulating 128-deep dots).
    out_split = jax.block_until_ready(
        dynamics_extractor_full_stereo(x, params, compute_dtype=jnp.float32,
                                       split_deep_contraction=True))
    assert jnp.allclose(out_split, ref, atol=1e-2, rtol=1e-2), float(
        jnp.max(jnp.abs(out_split - ref)))

    # Default bf16-MXU-operand / f32-accumulate path (the perf configuration).
    out = jax.block_until_ready(dynamics_extractor_full_stereo(x, params))
    assert out.shape == ref.shape, (out.shape, ref.shape)
    assert jnp.allclose(out, ref, atol=5e-2, rtol=5e-2), float(
        jnp.max(jnp.abs(out - ref)))

    print("KERNEL_OK")
</pallas_src>

<mosaic_0001>
module attributes {stable_mosaic.version = 11 : i64} {
  func.func @kernel(%arg0: i32, %arg1: memref<2x66x2xf32, #tpu.memory_space<vmem>>, %arg2: memref<6x16xf32, #tpu.memory_space<vmem>>, %arg3: memref<1x16xf32, #tpu.memory_space<vmem>>, %arg4: memref<48x16xf32, #tpu.memory_space<vmem>>, %arg5: memref<1x16xf32, #tpu.memory_space<vmem>>, %arg6: memref<48x128xf32, #tpu.memory_space<vmem>>, %arg7: memref<1x128xf32, #tpu.memory_space<vmem>>, %arg8: memref<384x128xf32, #tpu.memory_space<vmem>>, %arg9: memref<1x128xf32, #tpu.memory_space<vmem>>, %arg10: memref<384x256xf32, #tpu.memory_space<vmem>>, %arg11: memref<1x256xf32, #tpu.memory_space<vmem>>, %arg12: memref<2x256x8xf32, #tpu.memory_space<vmem>>, %arg13: memref<2x34x16xf32, #tpu.memory_space<vmem>>, %arg14: memref<2x34x16xf32, #tpu.memory_space<vmem>>, %arg15: memref<2x18x128xf32, #tpu.memory_space<vmem>>, %arg16: memref<2x18x128xf32, #tpu.memory_space<vmem>>) attributes {dimension_semantics = [#tpu.dimension_semantics<parallel>], iteration_bounds = array<i64: 1>, scalar_prefetch = 0 : i64, scratch_operands = 4 : i64, tpu.core_type = #tpu.core_type<tc>, window_params = [{transform_indices = @transform_0, window_bounds = array<i64: 2, 66, 2>}, {pipeline_mode = #tpu.pipeline_mode<synchronous>, transform_indices = @transform_1, window_bounds = array<i64: 6, 16>}, {pipeline_mode = #tpu.pipeline_mode<synchronous>, transform_indices = @transform_2, window_bounds = array<i64: 1, 16>}, {pipeline_mode = #tpu.pipeline_mode<synchronous>, transform_indices = @transform_3, window_bounds = array<i64: 48, 16>}, {pipeline_mode = #tpu.pipeline_mode<synchronous>, transform_indices = @transform_4, window_bounds = array<i64: 1, 16>}, {pipeline_mode = #tpu.pipeline_mode<synchronous>, transform_indices = @transform_5, window_bounds = array<i64: 48, 128>}, {pipeline_mode = #tpu.pipeline_mode<synchronous>, transform_indices = @transform_6, window_bounds = array<i64: 1, 128>}, {pipeline_mode = #tpu.pipeline_mode<synchronous>, transform_indices = @transform_7, window_bounds = array<i64: 384, 128>}, {pipeline_mode = #tpu.pipeline_mode<synchronous>, transform_indices = @transform_8, window_bounds = array<i64: 1, 128>}, {pipeline_mode = #tpu.pipeline_mode<synchronous>, transform_indices = @transform_9, window_bounds = array<i64: 384, 256>}, {pipeline_mode = #tpu.pipeline_mode<synchronous>, transform_indices = @transform_10, window_bounds = array<i64: 1, 256>}, {transform_indices = @transform_11, window_bounds = array<i64: 2, 256, 8>}]} {
    %c0 = arith.constant 0 : index
    %c0_0 = arith.constant 0 : index
    %c0_1 = arith.constant 0 : index
    %0 = tpu.strided_load %arg1[%c0, %c0_0, %c0_1] {strides = array<i32: 1, 2, 1>} : memref<2x66x2xf32, #tpu.memory_space<vmem>>, vector<2x32x2xf32>
    %c0_2 = arith.constant 0 : index
    %c1 = arith.constant 1 : index
    %c0_3 = arith.constant 0 : index
    %1 = tpu.strided_load %arg1[%c0_2, %c1, %c0_3] {strides = array<i32: 1, 2, 1>} : memref<2x66x2xf32, #tpu.memory_space<vmem>>, vector<2x32x2xf32>
    %c0_4 = arith.constant 0 : index
    %c2 = arith.constant 2 : index
    %c0_5 = arith.constant 0 : index
    %2 = tpu.strided_load %arg1[%c0_4, %c2, %c0_5] {strides = array<i32: 1, 2, 1>} : memref<2x66x2xf32, #tpu.memory_space<vmem>>, vector<2x32x2xf32>
    %3 = vector.shape_cast %0 : vector<2x32x2xf32> to vector<64x2xf32>
    %4 = vector.shape_cast %1 : vector<2x32x2xf32> to vector<64x2xf32>
    %5 = vector.shape_cast %2 : vector<2x32x2xf32> to vector<64x2xf32>
    %6 = tpu.concatenate %3, %4, %5 in 1 : vector<64x2xf32>, vector<64x2xf32>, vector<64x2xf32> -> vector<64x6xf32>
    %c0_6 = arith.constant 0 : index
    %c0_7 = arith.constant 0 : index
    %7 = vector.load %arg2[%c0_6, %c0_7] : memref<6x16xf32, #tpu.memory_space<vmem>>, vector<6x16xf32>
    %cst = arith.constant dense<0.000000e+00> : vector<64x16xf32>
    %8 = tpu.matmul %6, %7, %cst {dimension_numbers = #tpu.dot_dimension_numbers<[1], [0], [0], [1], [0, 0, 1, 1], [], []>} : vector<64x6xf32>, vector<6x16xf32>, vector<64x16xf32> -> vector<64x16xf32>
    %c0_8 = arith.constant 0 : index
    %c0_9 = arith.constant 0 : index
    %9 = vector.load %arg3[%c0_8, %c0_9] : memref<1x16xf32, #tpu.memory_space<vmem>>, vector<1x16xf32>
    %10 = vector.broadcast %9 : vector<1x16xf32> to vector<64x16xf32>
    %11 = arith.addf %8, %10 : vector<64x16xf32>
    %cst_10 = arith.constant 5.000000e-01 : f32
    %12 = vector.broadcast %cst_10 : f32 to vector<64x16xf32>
    %13 = arith.mulf %11, %12 : vector<64x16xf32>
    %14 = math.tanh %13 : vector<64x16xf32>
    %cst_11 = arith.constant 5.000000e-01 : f32
    %15 = vector.broadcast %cst_11 : f32 to vector<64x16xf32>
    %16 = arith.mulf %14, %15 : vector<64x16xf32>
    %cst_12 = arith.constant 5.000000e-01 : f32
    %17 = vector.broadcast %cst_12 : f32 to vector<64x16xf32>
    %18 = arith.addf %16, %17 : vector<64x16xf32>
    %19 = arith.mulf %11, %18 : vector<64x16xf32>
    %cst_13 = arith.constant 0.000000e+00 : f32
    %20 = vector.broadcast %cst_13 : f32 to vector<2x1x16xf32>
    %c0_14 = arith.constant 0 : index
    %c0_15 = arith.constant 0 : index
    %c0_16 = arith.constant 0 : index
    %21 = vector.load %arg13[%c0_14, %c0_15, %c0_16] : memref<2x34x16xf32, #tpu.memory_space<vmem>>, vector<2x1x16xf32>
    tpu.vector_store %arg13[%c0_14, %c0_15, %c0_16], %20 {strides = array<i32>} : memref<2x34x16xf32, #tpu.memory_space<vmem>>, vector<2x1x16xf32>,
    %c0_17 = arith.constant 0 : index
    %c33 = arith.constant 33 : index
    %c0_18 = arith.constant 0 : index
    %22 = vector.load %arg13[%c0_17, %c33, %c0_18] : memref<2x34x16xf32, #tpu.memory_space<vmem>>, vector<2x1x16xf32>
    tpu.vector_store %arg13[%c0_17, %c33, %c0_18], %20 {strides = array<i32>} : memref<2x34x16xf32, #tpu.memory_space<vmem>>, vector<2x1x16xf32>,
    %23 = vector.shape_cast %19 : vector<64x16xf32> to vector<2x32x16xf32>
    %c0_19 = arith.constant 0 : index
    %c1_20 = arith.constant 1 : index
    %c0_21 = arith.constant 0 : index
    %24 = vector.load %arg13[%c0_19, %c1_20, %c0_21] : memref<2x34x16xf32, #tpu.memory_space<vmem>>, vector<2x32x16xf32>
    tpu.vector_store %arg13[%c0_19, %c1_20, %c0_21], %23 {strides = array<i32>} : memref<2x34x16xf32, #tpu.memory_space<vmem>>, vector<2x32x16xf32>,
    %c0_22 = arith.constant 0 : index
    %c0_23 = arith.constant 0 : index
    %c0_24 = arith.constant 0 : index
    %25 = vector.load %arg13[%c0_22, %c0_23, %c0_24] : memref<2x34x16xf32, #tpu.memory_space<vmem>>, vector<2x32x16xf32>
    %c0_25 = arith.constant 0 : index
    %c1_26 = arith.constant 1 : index
    %c0_27 = arith.constant 0 : index
    %26 = vector.load %arg13[%c0_25, %c1_26, %c0_27] : memref<2x34x16xf32, #tpu.memory_space<vmem>>, vector<2x32x16xf32>
    %c0_28 = arith.constant 0 : index
    %c2_29 = arith.constant 2 : index
    %c0_30 = arith.constant 0 : index
    %27 = vector.load %arg13[%c0_28, %c2_29, %c0_30] : memref<2x34x16xf32, #tpu.memory_space<vmem>>, vector<2x32x16xf32>
    %28 = vector.shape_cast %25 : vector<2x32x16xf32> to vector<64x16xf32>
    %29 = vector.shape_cast %26 : vector<2x32x16xf32> to vector<64x16xf32>
    %30 = vector.shape_cast %27 : vector<2x32x16xf32> to vector<64x16xf32>
    %31 = tpu.concatenate %28, %29, %30 in 1 : vector<64x16xf32>, vector<64x16xf32>, vector<64x16xf32> -> vector<64x48xf32>
    %c0_31 = arith.constant 0 : index
    %c0_32 = arith.constant 0 : index
    %32 = vector.load %arg4[%c0_31, %c0_32] : memref<48x16xf32, #tpu.memory_space<vmem>>, vector<48x16xf32>
    %cst_33 = arith.constant dense<0.000000e+00> : vector<64x16xf32>
    %33 = tpu.matmul %31, %32, %cst_33 {dimension_numbers = #tpu.dot_dimension_numbers<[1], [0], [0], [1], [0, 0, 1, 1], [], []>} : vector<64x48xf32>, vector<48x16xf32>, vector<64x16xf32> -> vector<64x16xf32>
    %c0_34 = arith.constant 0 : index
    %c0_35 = arith.constant 0 : index
    %34 = vector.load %arg5[%c0_34, %c0_35] : memref<1x16xf32, #tpu.memory_space<vmem>>, vector<1x16xf32>
    %35 = vector.broadcast %34 : vector<1x16xf32> to vector<64x16xf32>
    %36 = arith.addf %33, %35 : vector<64x16xf32>
    %cst_36 = arith.constant 5.000000e-01 : f32
    %37 = vector.broadcast %cst_36 : f32 to vector<64x16xf32>
    %38 = arith.mulf %36, %37 : vector<64x16xf32>
    %39 = math.tanh %38 : vector<64x16xf32>
    %cst_37 = arith.constant 5.000000e-01 : f32
    %40 = vector.broadcast %cst_37 : f32 to vector<64x16xf32>
    %41 = arith.mulf %39, %40 : vector<64x16xf32>
    %cst_38 = arith.constant 5.000000e-01 : f32
    %42 = vector.broadcast %cst_38 : f32 to vector<64x16xf32>
    %43 = arith.addf %41, %42 : vector<64x16xf32>
    %44 = arith.mulf %36, %43 : vector<64x16xf32>
    %cst_39 = arith.constant 0.000000e+00 : f32
    %45 = vector.broadcast %cst_39 : f32 to vector<2x1x16xf32>
    %c0_40 = arith.constant 0 : index
    %c0_41 = arith.constant 0 : index
    %c0_42 = arith.constant 0 : index
    %46 = vector.load %arg14[%c0_40, %c0_41, %c0_42] : memref<2x34x16xf32, #tpu.memory_space<vmem>>, vector<2x1x16xf32>
    tpu.vector_store %arg14[%c0_40, %c0_41, %c0_42], %45 {strides = array<i32>} : memref<2x34x16xf32, #tpu.memory_space<vmem>>, vector<2x1x16xf32>,
    %c0_43 = arith.constant 0 : index
    %c33_44 = arith.constant 33 : index
    %c0_45 = arith.constant 0 : index
    %47 = vector.load %arg14[%c0_43, %c33_44, %c0_45] : memref<2x34x16xf32, #tpu.memory_space<vmem>>, vector<2x1x16xf32>
    tpu.vector_store %arg14[%c0_43, %c33_44, %c0_45], %45 {strides = array<i32>} : memref<2x34x16xf32, #tpu.memory_space<vmem>>, vector<2x1x16xf32>,
    %48 = vector.shape_cast %44 : vector<64x16xf32> to vector<2x32x16xf32>
    %c0_46 = arith.constant 0 : index
    %c1_47 = arith.constant 1 : index
    %c0_48 = arith.constant 0 : index
    %49 = vector.load %arg14[%c0_46, %c1_47, %c0_48] : memref<2x34x16xf32, #tpu.memory_space<vmem>>, vector<2x32x16xf32>
    tpu.vector_store %arg14[%c0_46, %c1_47, %c0_48], %48 {strides = array<i32>} : memref<2x34x16xf32, #tpu.memory_space<vmem>>, vector<2x32x16xf32>,
    %c0_49 = arith.constant 0 : index
    %c0_50 = arith.constant 0 : index
    %c0_51 = arith.constant 0 : index
    %50 = tpu.strided_load %arg14[%c0_49, %c0_50, %c0_51] {strides = array<i32: 1, 2, 1>} : memref<2x34x16xf32, #tpu.memory_space<vmem>>, vector<2x16x16xf32>
    %c0_52 = arith.constant 0 : index
    %c1_53 = arith.constant 1 : index
    %c0_54 = arith.constant 0 : index
    %51 = tpu.strided_load %arg14[%c0_52, %c1_53, %c0_54] {strides = array<i32: 1, 2, 1>} : memref<2x34x16xf32, #tpu.memory_space<vmem>>, vector<2x16x16xf32>
    %c0_55 = arith.constant 0 : index
    %c2_56 = arith.constant 2 : index
    %c0_57 = arith.constant 0 : index
    %52 = tpu.strided_load %arg14[%c0_55, %c2_56, %c0_57] {strides = array<i32: 1, 2, 1>} : memref<2x34x16xf32, #tpu.memory_space<vmem>>, vector<2x16x16xf32>
    %53 = vector.shape_cast %50 : vector<2x16x16xf32> to vector<32x16xf32>
    %54 = vector.shape_cast %51 : vector<2x16x16xf32> to vector<32x16xf32>
    %55 = vector.shape_cast %52 : vector<2x16x16xf32> to vector<32x16xf32>
    %56 = tpu.concatenate %53, %54, %55 in 1 : vector<32x16xf32>, vector<32x16xf32>, vector<32x16xf32> -> vector<32x48xf32>
    %c0_58 = arith.constant 0 : index
    %c0_59 = arith.constant 0 : index
    %57 = vector.load %arg6[%c0_58, %c0_59] : memref<48x128xf32, #tpu.memory_space<vmem>>, vector<48x128xf32>
    %cst_60 = arith.constant dense<0.000000e+00> : vector<32x128xf32>
    %58 = tpu.matmul %56, %57, %cst_60 {dimension_numbers = #tpu.dot_dimension_numbers<[1], [0], [0], [1], [0, 0, 1, 1], [], []>} : vector<32x48xf32>, vector<48x128xf32>, vector<32x128xf32> -> vector<32x128xf32>
    %c0_61 = arith.constant 0 : index
    %c0_62 = arith.constant 0 : index
    %59 = vector.load %arg7[%c0_61, %c0_62] : memref<1x128xf32, #tpu.memory_space<vmem>>, vector<1x128xf32>
    %60 = vector.broadcast %59 : vector<1x128xf32> to vector<32x128xf32>
    %61 = arith.addf %58, %60 : vector<32x128xf32>
    %cst_63 = arith.constant 5.000000e-01 : f32
    %62 = vector.broadcast %cst_63 : f32 to vector<32x128xf32>
    %63 = arith.mulf %61, %62 : vector<32x128xf32>
    %64 = math.tanh %63 : vector<32x128xf32>
    %cst_64 = arith.constant 5.000000e-01 : f32
    %65 = vector.broadcast %cst_64 : f32 to vector<32x128xf32>
    %66 = arith.mulf %64, %65 : vector<32x128xf32>
    %cst_65 = arith.constant 5.000000e-01 : f32
    %67 = vector.broadcast %cst_65 : f32 to vector<32x128xf32>
    %68 = arith.addf %66, %67 : vector<32x128xf32>
    %69 = arith.mulf %61, %68 : vector<32x128xf32>
    %cst_66 = arith.constant 0.000000e+00 : f32
    %70 = vector.broadcast %cst_66 : f32 to vector<2x1x128xf32>
    %c0_67 = arith.constant 0 : index
    %c0_68 = arith.constant 0 : index
    %c0_69 = arith.constant 0 : index
    %71 = vector.load %arg15[%c0_67, %c0_68, %c0_69] : memref<2x18x128xf32, #tpu.memory_space<vmem>>, vector<2x1x128xf32>
    tpu.vector_store %arg15[%c0_67, %c0_68, %c0_69], %70 {strides = array<i32>} : memref<2x18x128xf32, #tpu.memory_space<vmem>>, vector<2x1x128xf32>,
    %c0_70 = arith.constant 0 : index
    %c17 = arith.constant 17 : index
    %c0_71 = arith.constant 0 : index
    %72 = vector.load %arg15[%c0_70, %c17, %c0_71] : memref<2x18x128xf32, #tpu.memory_space<vmem>>, vector<2x1x128xf32>
    tpu.vector_store %arg15[%c0_70, %c17, %c0_71], %70 {strides = array<i32>} : memref<2x18x128xf32, #tpu.memory_space<vmem>>, vector<2x1x128xf32>,
    %73 = vector.shape_cast %69 : vector<32x128xf32> to vector<2x16x128xf32>
    %c0_72 = arith.constant 0 : index
    %c1_73 = arith.constant 1 : index
    %c0_74 = arith.constant 0 : index
    %74 = vector.load %arg15[%c0_72, %c1_73, %c0_74] : memref<2x18x128xf32, #tpu.memory_space<vmem>>, vector<2x16x128xf32>
    tpu.vector_store %arg15[%c0_72, %c1_73, %c0_74], %73 {strides = array<i32>} : memref<2x18x128xf32, #tpu.memory_space<vmem>>, vector<2x16x128xf32>,
    %c0_75 = arith.constant 0 : index
    %c0_76 = arith.constant 0 : index
    %c0_77 = arith.constant 0 : index
    %75 = vector.load %arg15[%c0_75, %c0_76, %c0_77] : memref<2x18x128xf32, #tpu.memory_space<vmem>>, vector<2x16x128xf32>
    %c0_78 = arith.constant 0 : index
    %c1_79 = arith.constant 1 : index
    %c0_80 = arith.constant 0 : index
    %76 = vector.load %arg15[%c0_78, %c1_79, %c0_80] : memref<2x18x128xf32, #tpu.memory_space<vmem>>, vector<2x16x128xf32>
    %c0_81 = arith.constant 0 : index
    %c2_82 = arith.constant 2 : index
    %c0_83 = arith.constant 0 : index
    %77 = vector.load %arg15[%c0_81, %c2_82, %c0_83] : memref<2x18x128xf32, #tpu.memory_space<vmem>>, vector<2x16x128xf32>
    %78 = vector.shape_cast %75 : vector<2x16x128xf32> to vector<32x128xf32>
    %79 = vector.shape_cast %76 : vector<2x16x128xf32> to vector<32x128xf32>
    %80 = vector.shape_cast %77 : vector<2x16x128xf32> to vector<32x128xf32>
    %81 = tpu.concatenate %78, %79, %80 in 1 : vector<32x128xf32>, vector<32x128xf32>, vector<32x128xf32> -> vector<32x384xf32>
    %c0_84 = arith.constant 0 : index
    %c0_85 = arith.constant 0 : index
    %82 = vector.load %arg8[%c0_84, %c0_85] : memref<384x128xf32, #tpu.memory_space<vmem>>, vector<384x128xf32>
    %cst_86 = arith.constant dense<0.000000e+00> : vector<32x128xf32>
    %83 = tpu.matmul %81, %82, %cst_86 {dimension_numbers = #tpu.dot_dimension_numbers<[1], [0], [0], [1], [0, 0, 1, 1], [], []>} : vector<32x384xf32>, vector<384x128xf32>, vector<32x128xf32> -> vector<32x128xf32>
    %c0_87 = arith.constant 0 : index
    %c0_88 = arith.constant 0 : index
    %84 = vector.load %arg9[%c0_87, %c0_88] : memref<1x128xf32, #tpu.memory_space<vmem>>, vector<1x128xf32>
    %85 = vector.broadcast %84 : vector<1x128xf32> to vector<32x128xf32>
    %86 = arith.addf %83, %85 : vector<32x128xf32>
    %cst_89 = arith.constant 5.000000e-01 : f32
    %87 = vector.broadcast %cst_89 : f32 to vector<32x128xf32>
    %88 = arith.mulf %86, %87 : vector<32x128xf32>
    %89 = math.tanh %88 : vector<32x128xf32>
    %cst_90 = arith.constant 5.000000e-01 : f32
    %90 = vector.broadcast %cst_90 : f32 to vector<32x128xf32>
    %91 = arith.mulf %89, %90 : vector<32x128xf32>
    %cst_91 = arith.constant 5.000000e-01 : f32
    %92 = vector.broadcast %cst_91 : f32 to vector<32x128xf32>
    %93 = arith.addf %91, %92 : vector<32x128xf32>
    %94 = arith.mulf %86, %93 : vector<32x128xf32>
    %cst_92 = arith.constant 0.000000e+00 : f32
    %95 = vector.broadcast %cst_92 : f32 to vector<2x1x128xf32>
    %c0_93 = arith.constant 0 : index
    %c0_94 = arith.constant 0 : index
    %c0_95 = arith.constant 0 : index
    %96 = vector.load %arg16[%c0_93, %c0_94, %c0_95] : memref<2x18x128xf32, #tpu.memory_space<vmem>>, vector<2x1x128xf32>
    tpu.vector_store %arg16[%c0_93, %c0_94, %c0_95], %95 {strides = array<i32>} : memref<2x18x128xf32, #tpu.memory_space<vmem>>, vector<2x1x128xf32>,
    %c0_96 = arith.constant 0 : index
    %c17_97 = arith.constant 17 : index
    %c0_98 = arith.constant 0 : index
    %97 = vector.load %arg16[%c0_96, %c17_97, %c0_98] : memref<2x18x128xf32, #tpu.memory_space<vmem>>, vector<2x1x128xf32>
    tpu.vector_store %arg16[%c0_96, %c17_97, %c0_98], %95 {strides = array<i32>} : memref<2x18x128xf32, #tpu.memory_space<vmem>>, vector<2x1x128xf32>,
    %98 = vector.shape_cast %94 : vector<32x128xf32> to vector<2x16x128xf32>
    %c0_99 = arith.constant 0 : index
    %c1_100 = arith.constant 1 : index
    %c0_101 = arith.constant 0 : index
    %99 = vector.load %arg16[%c0_99, %c1_100, %c0_101] : memref<2x18x128xf32, #tpu.memory_space<vmem>>, vector<2x16x128xf32>
    tpu.vector_store %arg16[%c0_99, %c1_100, %c0_101], %98 {strides = array<i32>} : memref<2x18x128xf32, #tpu.memory_space<vmem>>, vector<2x16x128xf32>,
    %c0_102 = arith.constant 0 : index
    %c0_103 = arith.constant 0 : index
    %c0_104 = arith.constant 0 : index
    %100 = tpu.strided_load %arg16[%c0_102, %c0_103, %c0_104] {strides = array<i32: 1, 2, 1>} : memref<2x18x128xf32, #tpu.memory_space<vmem>>, vector<2x8x128xf32>
    %c0_105 = arith.constant 0 : index
    %c1_106 = arith.constant 1 : index
    %c0_107 = arith.constant 0 : index
    %101 = tpu.strided_load %arg16[%c0_105, %c1_106, %c0_107] {strides = array<i32: 1, 2, 1>} : memref<2x18x128xf32, #tpu.memory_space<vmem>>, vector<2x8x128xf32>
    %c0_108 = arith.constant 0 : index
    %c2_109 = arith.constant 2 : index
    %c0_110 = arith.constant 0 : index
    %102 = tpu.strided_load %arg16[%c0_108, %c2_109, %c0_110] {strides = array<i32: 1, 2, 1>} : memref<2x18x128xf32, #tpu.memory_space<vmem>>, vector<2x8x128xf32>
    %103 = vector.shape_cast %100 : vector<2x8x128xf32> to vector<16x128xf32>
    %104 = vector.shape_cast %101 : vector<2x8x128xf32> to vector<16x128xf32>
    %105 = vector.shape_cast %102 : vector<2x8x128xf32> to vector<16x128xf32>
    %106 = tpu.concatenate %103, %104, %105 in 1 : vector<16x128xf32>, vector<16x128xf32>, vector<16x128xf32> -> vector<16x384xf32>
    %c0_111 = arith.constant 0 : index
    %c0_112 = arith.constant 0 : index
    %107 = vector.load %arg10[%c0_111, %c0_112] : memref<384x256xf32, #tpu.memory_space<vmem>>, vector<384x256xf32>
    %cst_113 = arith.constant dense<0.000000e+00> : vector<16x256xf32>
    %108 = tpu.matmul %106, %107, %cst_113 {dimension_numbers = #tpu.dot_dimension_numbers<[1], [0], [0], [1], [0, 0, 1, 1], [], []>} : vector<16x384xf32>, vector<384x256xf32>, vector<16x256xf32> -> vector<16x256xf32>
    %c0_114 = arith.constant 0 : index
    %c0_115 = arith.constant 0 : index
    %109 = vector.load %arg11[%c0_114, %c0_115] : memref<1x256xf32, #tpu.memory_space<vmem>>, vector<1x256xf32>
    %110 = vector.broadcast %109 : vector<1x256xf32> to vector<16x256xf32>
    %111 = arith.addf %108, %110 : vector<16x256xf32>
    %112 = vector.extract_strided_slice %111 {offsets = [0, 0], sizes = [8, 256], strides = [1, 1]} : vector<16x256xf32> to vector<8x256xf32>
    %113 = tpu.transpose %112, [1, 0] : vector<8x256xf32> -> vector<256x8xf32>
    %c0_116 = arith.constant 0 : index
    %c0_117 = arith.constant 0 : index
    %c0_118 = arith.constant 0 : index
    %114 = vector.load %arg12[%c0_116, %c0_117, %c0_118] : memref<2x256x8xf32, #tpu.memory_space<vmem>>, vector<1x256x8xf32>
    %115 = vector.shape_cast %114 : vector<1x256x8xf32> to vector<256x8xf32>
    %116 = vector.shape_cast %113 : vector<256x8xf32> to vector<1x256x8xf32>
    tpu.vector_store %arg12[%c0_116, %c0_117, %c0_118], %116 {strides = array<i32>} : memref<2x256x8xf32, #tpu.memory_space<vmem>>, vector<1x256x8xf32>,
    %117 = vector.extract_strided_slice %111 {offsets = [8, 0], sizes = [8, 256], strides = [1, 1]} : vector<16x256xf32> to vector<8x256xf32>
    %118 = tpu.transpose %117, [1, 0] : vector<8x256xf32> -> vector<256x8xf32>
    %c1_119 = arith.constant 1 : index
    %c0_120 = arith.constant 0 : index
    %c0_121 = arith.constant 0 : index
    %119 = vector.load %arg12[%c1_119, %c0_120, %c0_121] : memref<2x256x8xf32, #tpu.memory_space<vmem>>, vector<1x256x8xf32>
    %120 = vector.shape_cast %119 : vector<1x256x8xf32> to vector<256x8xf32>
    %121 = vector.shape_cast %118 : vector<256x8xf32> to vector<1x256x8xf32>
    tpu.vector_store %arg12[%c1_119, %c0_120, %c0_121], %121 {strides = array<i32>} : memref<2x256x8xf32, #tpu.memory_space<vmem>>, vector<1x256x8xf32>,
    return
  }
  func.func @transform_0(%arg0: i32) -> (i32, i32, i32) {
    %c0_i32 = arith.constant 0 : i32
    %c0_i32_0 = arith.constant 0 : i32
    %c0_i32_1 = arith.constant 0 : i32
    return %arg0, %c0_i32, %c0_i32_0 : i32, i32, i32
  }
  func.func @transform_1(%arg0: i32) -> (i32, i32) {
    %c0_i32 = arith.constant 0 : i32
    %c0_i32_0 = arith.constant 0 : i32
    %c0_i32_1 = arith.constant 0 : i32
    return %c0_i32, %c0_i32_0 : i32, i32
  }
  func.func @transform_2(%arg0: i32) -> (i32, i32) {
    %c0_i32 = arith.constant 0 : i32
    %c0_i32_0 = arith.constant 0 : i32
    %c0_i32_1 = arith.constant 0 : i32
    return %c0_i32, %c0_i32_0 : i32, i32
  }
  func.func @transform_3(%arg0: i32) -> (i32, i32) {
    %c0_i32 = arith.constant 0 : i32
    %c0_i32_0 = arith.constant 0 : i32
    %c0_i32_1 = arith.constant 0 : i32
    return %c0_i32, %c0_i32_0 : i32, i32
  }
  func.func @transform_4(%arg0: i32) -> (i32, i32) {
    %c0_i32 = arith.constant 0 : i32
    %c0_i32_0 = arith.constant 0 : i32
    %c0_i32_1 = arith.constant 0 : i32
    return %c0_i32, %c0_i32_0 : i32, i32
  }
  func.func @transform_5(%arg0: i32) -> (i32, i32) {
    %c0_i32 = arith.constant 0 : i32
    %c0_i32_0 = arith.constant 0 : i32
    %c0_i32_1 = arith.constant 0 : i32
    return %c0_i32, %c0_i32_0 : i32, i32
  }
  func.func @transform_6(%arg0: i32) -> (i32, i32) {
    %c0_i32 = arith.constant 0 : i32
    %c0_i32_0 = arith.constant 0 : i32
    %c0_i32_1 = arith.constant 0 : i32
    return %c0_i32, %c0_i32_0 : i32, i32
  }
  func.func @transform_7(%arg0: i32) -> (i32, i32) {
    %c0_i32 = arith.constant 0 : i32
    %c0_i32_0 = arith.constant 0 : i32
    %c0_i32_1 = arith.constant 0 : i32
    return %c0_i32, %c0_i32_0 : i32, i32
  }
  func.func @transform_8(%arg0: i32) -> (i32, i32) {
    %c0_i32 = arith.constant 0 : i32
    %c0_i32_0 = arith.constant 0 : i32
    %c0_i32_1 = arith.constant 0 : i32
    return %c0_i32, %c0_i32_0 : i32, i32
  }
  func.func @transform_9(%arg0: i32) -> (i32, i32) {
    %c0_i32 = arith.constant 0 : i32
    %c0_i32_0 = arith.constant 0 : i32
    %c0_i32_1 = arith.constant 0 : i32
    return %c0_i32, %c0_i32_0 : i32, i32
  }
  func.func @transform_10(%arg0: i32) -> (i32, i32) {
    %c0_i32 = arith.constant 0 : i32
    %c0_i32_0 = arith.constant 0 : i32
    %c0_i32_1 = arith.constant 0 : i32
    return %c0_i32, %c0_i32_0 : i32, i32
  }
  func.func @transform_11(%arg0: i32) -> (i32, i32, i32) {
    %c0_i32 = arith.constant 0 : i32
    %c0_i32_0 = arith.constant 0 : i32
    %c0_i32_1 = arith.constant 0 : i32
    return %arg0, %c0_i32, %c0_i32_0 : i32, i32, i32
  }
}

</mosaic_0001>

<llo_original>
// kernel: tpu_custom_call.1
$region0: #{tpu_custom_call.1}
  #allocation0 [shape = 'u32[]', space=smem, size = 0x4, offset = 0x4, fixed_abs, tag = 'smem constant byte address 0x4 - core index']
  #allocation1 [shape = 'u32[144,128]{1,0:T(1,128)}', space=vmem, size = 0x12000, scoped, tag = 'internal scratch']
  #allocation2 [shape = 'f32[2,34,16]{2,1,0:T(8,128)}', space=vmem, size = 0xa000, scoped, tag = 'scratch operand']
  #allocation3 [shape = 'f32[2,34,16]{2,1,0:T(8,128)}', space=vmem, size = 0xa000, scoped, tag = 'scratch operand']
  #allocation4 [shape = 'f32[2,18,128]{2,1,0:T(8,128)}', space=vmem, size = 0x6000, scoped, tag = 'scratch operand']
  #allocation5 [shape = 'f32[2,18,128]{2,1,0:T(8,128)}', space=vmem, size = 0x6000, scoped, tag = 'scratch operand']
  %s0 = inlined_call_operand.vmem [shape: f32[2,66,2], index: 0, kind: input, shape index: {}]
  %s1 = inlined_call_operand.vmem [shape: f32[6,16], index: 1, kind: input, shape index: {}]
  %s2 = inlined_call_operand.vmem [shape: f32[1,16], index: 2, kind: input, shape index: {}]
  %s3 = inlined_call_operand.vmem [shape: f32[48,16], index: 3, kind: input, shape index: {}]
  %s4 = inlined_call_operand.vmem [shape: f32[1,16], index: 4, kind: input, shape index: {}]
  %s5 = inlined_call_operand.vmem [shape: f32[48,128], index: 5, kind: input, shape index: {}]
  %s6 = inlined_call_operand.vmem [shape: f32[1,128], index: 6, kind: input, shape index: {}]
  %s7 = inlined_call_operand.hbm [shape: f32[384,128], index: 7, kind: input, shape index: {}]
  %s8 = inlined_call_operand.vmem [shape: f32[1,128], index: 8, kind: input, shape index: {}]
  %s9 = inlined_call_operand.hbm [shape: f32[384,256], index: 9, kind: input, shape index: {}]
  %s10 = inlined_call_operand.vmem [shape: f32[1,256], index: 10, kind: input, shape index: {}]
  %s11 = inlined_call_operand.vmem [shape: f32[2,256,8], index: 11, kind: output, shape index: {}]
  %s12 = sld [smem:[#allocation0]]
  $region62: #{tpu_custom_call.1} parent=0
    _
  %s14 = ssub.s32 1, %s12
  %s15 = scalar_select 0, %s14, %s12
  $region1: #{tpu_custom_call.1} parent=0
    #allocation6 [shape = 'u8[196608]{0}', space=vmem, size = 0x30000, scoped, tag = 'input window, operand 7, single buffered']
    #allocation7 [shape = 's32[1]{0}', space=sflag, size = 0x4, scoped, tag = 'scoped memory for tpu_custom_call.1']
    #allocation8 [shape = 'u8[393216]{0}', space=vmem, size = 0x60000, scoped, tag = 'input window, operand 9, single buffered']
    #allocation9 [shape = 's32[1]{0}', space=sflag, size = 0x4, scoped, tag = 'scoped memory for tpu_custom_call.1']
    %16 = vsyncpa [#allocation7], 0
    %17 = vsyncpa [#allocation9], 0
    // Predicated region
    $region2: #{tpu_custom_call.1} parent=1 // pred_check
      _
    $region3: #{tpu_custom_call.1} parent=1 // pred_check_branch
      %19 = sbr.rel (0) target = $region5
    $region4: #{tpu_custom_call.1} parent=1 // pred_region
      _
    $region5: #{tpu_custom_call.1} parent=1 // pred_fallthru
      _
    // Predicated region
    $region6: #{tpu_custom_call.1} parent=1 // pred_check
      _
    $region7: #{tpu_custom_call.1} parent=1 // pred_check_branch
      %21 = sbr.rel (0) target = $region9
    $region8: #{tpu_custom_call.1} parent=1 // pred_region
      _
    $region9: #{tpu_custom_call.1} parent=1 // pred_fallthru
      _
    // Predicated region
    $region10: #{tpu_custom_call.1} parent=1 // pred_check
      _
    $region11: #{tpu_custom_call.1} parent=1 // pred_check_branch
      %23 = sbr.rel (0) target = $region13
    $region12: #{tpu_custom_call.1} parent=1 // pred_region
      _
    $region13: #{tpu_custom_call.1} parent=1 // pred_fallthru
      _
    // Predicated region
    $region14: #{tpu_custom_call.1} parent=1 // pred_check
      _
    $region15: #{tpu_custom_call.1} parent=1 // pred_check_branch
      %25 = sbr.rel (0) target = $region17
    $region16: #{tpu_custom_call.1} parent=1 // pred_region
      _
    $region17: #{tpu_custom_call.1} parent=1 // pred_fallthru
      _
    // Predicated region
    $region18: #{tpu_custom_call.1} parent=1 // pred_check
      _
    $region19: #{tpu_custom_call.1} parent=1 // pred_check_branch
      %27 = sbr.rel (0) target = $region21
    $region20: #{tpu_custom_call.1} parent=1 // pred_region
      _
    $region21: #{tpu_custom_call.1} parent=1 // pred_fallthru
      _
    // Predicated region
    $region22: #{tpu_custom_call.1} parent=1 // pred_check
      _
    $region23: #{tpu_custom_call.1} parent=1 // pred_check_branch
      %29 = sbr.rel (0) target = $region25
    $region24: #{tpu_custom_call.1} parent=1 // pred_region
      _
    $region25: #{tpu_custom_call.1} parent=1 // pred_fallthru
      _
    // Predicated region
    $region26: #{tpu_custom_call.1} parent=1 // pred_check
      _
    $region27: #{tpu_custom_call.1} parent=1 // pred_check_branch
      %31 = sbr.rel (0) target = $region29
    $region28: #{tpu_custom_call.1} parent=1 // pred_region
      _
    $region29: #{tpu_custom_call.1} parent=1 // pred_fallthru
      _
    // Predicated region
    $region30: #{tpu_custom_call.1} parent=1 // pred_check
      _
    $region31: #{tpu_custom_call.1} parent=1 // pred_check_branch
      %33 = sbr.rel (0) target = $region33
    $region32: #{tpu_custom_call.1} parent=1 // pred_region
      %s35 = ssub.s32 6144, 6144
      %36 = vsyncadd [#allocation7], %s35
      %s37 = sshll.u32 [#allocation6], 4
      %s38 = int_to_ptr.vmem [resolvable:$true] %s37
      %43 = dma.hbm_to_vmem [thread:$0]  %s7, 6144, %s38, [#allocation7], 128, 128, 8
    $region33: #{tpu_custom_call.1} parent=1 // pred_fallthru
      _
    // Predicated region
    $region34: #{tpu_custom_call.1} parent=1 // pred_check
      _
    $region35: #{tpu_custom_call.1} parent=1 // pred_check_branch
      %45 = sbr.rel (0) target = $region37
    $region36: #{tpu_custom_call.1} parent=1 // pred_region
      _
    $region37: #{tpu_custom_call.1} parent=1 // pred_fallthru
      _
    // Predicated region
    $region38: #{tpu_custom_call.1} parent=1 // pred_check
      _
    $region39: #{tpu_custom_call.1} parent=1 // pred_check_branch
      %47 = sbr.rel (0) target = $region41
    $region40: #{tpu_custom_call.1} parent=1 // pred_region
      %s49 = ssub.s32 12288, 12288
      %50 = vsyncadd [#allocation9], %s49
      %s51 = sshll.u32 [#allocation8], 4
      %s52 = int_to_ptr.vmem [resolvable:$true] %s51
      %57 = dma.hbm_to_vmem [thread:$0]  %s9, 12288, %s52, [#allocation9], 256, 256, 16
    $region41: #{tpu_custom_call.1} parent=1 // pred_fallthru
      _
    // Predicated region
    $region42: #{tpu_custom_call.1} parent=1 // pred_check
      _
    $region43: #{tpu_custom_call.1} parent=1 // pred_check_branch
      %59 = sbr.rel (0) target = $region45
    $region44: #{tpu_custom_call.1} parent=1 // pred_region
      _
    $region45: #{tpu_custom_call.1} parent=1 // pred_fallthru
      _
    // Predicated region
    $region46: #{tpu_custom_call.1} parent=1 // pred_check
      _
    $region47: #{tpu_custom_call.1} parent=1 // pred_check_branch
      %61 = sbr.rel (0) target = $region49
    $region48: #{tpu_custom_call.1} parent=1 // pred_region
      %62 = dma.done [#allocation7], 6144
    $region49: #{tpu_custom_call.1} parent=1 // pred_fallthru
      _
    // Predicated region
    $region50: #{tpu_custom_call.1} parent=1 // pred_check
      _
    $region51: #{tpu_custom_call.1} parent=1 // pred_check_branch
      %64 = sbr.rel (0) target = $region53
    $region52: #{tpu_custom_call.1} parent=1 // pred_region
      %65 = dma.done [#allocation9], 12288
    $region53: #{tpu_custom_call.1} parent=1 // pred_fallthru
      _
    %v66 = vld [vmem:[%s0] ss:$2 sm:$0xff]
    %s67 = scalar_lea.vmem %s0, 16
    %v68 = vld [vmem:[%s67] ss:$2 sm:$0xff]
    %s69 = scalar_lea.vmem %s0, 32
    %v70 = vld [vmem:[%s69] ss:$2 sm:$0xff]
    %s71 = scalar_lea.vmem %s0, 48
    %v72 = vld [vmem:[%s71] ss:$2 sm:$0xff]
    %s73 = scalar_lea.vmem %s0, 72
    %v74 = vld [vmem:[%s73] ss:$2 sm:$0xff]
    %s75 = scalar_lea.vmem %s0, 88
    %v76 = vld [vmem:[%s75] ss:$2 sm:$0xff]
    %s77 = scalar_lea.vmem %s0, 104
    %v78 = vld [vmem:[%s77] ss:$2 sm:$0xff]
    %s79 = scalar_lea.vmem %s0, 120
    %v80 = vld [vmem:[%s79] ss:$2 sm:$0xff]
    %s81 = scalar_lea.vmem %s0, 1
    %v82 = vld [vmem:[%s81] ss:$2 sm:$0xff]
    %s83 = scalar_lea.vmem %s0, 17
    %v84 = vld [vmem:[%s83] ss:$2 sm:$0xff]
    %s85 = scalar_lea.vmem %s0, 33
    %v86 = vld [vmem:[%s85] ss:$2 sm:$0xff]
    %s87 = scalar_lea.vmem %s0, 49
    %v88 = vld [vmem:[%s87] ss:$2 sm:$0xff]
    %s89 = scalar_lea.vmem %s0, 73
    %v90 = vld [vmem:[%s89] ss:$2 sm:$0xff]
    %s91 = scalar_lea.vmem %s0, 89
    %v92 = vld [vmem:[%s91] ss:$2 sm:$0xff]
    %s93 = scalar_lea.vmem %s0, 105
    %v94 = vld [vmem:[%s93] ss:$2 sm:$0xff]
    %s95 = scalar_lea.vmem %s0, 121
    %v96 = vld [vmem:[%s95] ss:$2 sm:$0xff]
    %s97 = scalar_lea.vmem %s0, 2
    %v98 = vld [vmem:[%s97] ss:$2 sm:$0xff]
    %s99 = scalar_lea.vmem %s0, 18
    %v100 = vld [vmem:[%s99] ss:$2 sm:$0xff]
    %s101 = scalar_lea.vmem %s0, 34
    %v102 = vld [vmem:[%s101] ss:$2 sm:$0xff]
    %s103 = scalar_lea.vmem %s0, 50
    %v104 = vld [vmem:[%s103] ss:$2 sm:$0xff]
    %s105 = scalar_lea.vmem %s0, 74
    %v106 = vld [vmem:[%s105] ss:$2 sm:$0xff]
    %s107 = scalar_lea.vmem %s0, 90
    %v108 = vld [vmem:[%s107] ss:$2 sm:$0xff]
    %s109 = scalar_lea.vmem %s0, 106
    %v110 = vld [vmem:[%s109] ss:$2 sm:$0xff]
    %s111 = scalar_lea.vmem %s0, 122
    %v112 = vld [vmem:[%s111] ss:$2 sm:$0xff]
    %121 = vrot.lane.b32.xlu0 %v82, 2
    %v122 = vpop.permute.xlu0 %121
    %123 = vrot.lane.b32.xlu0 %v84, 2
    %v124 = vpop.permute.xlu0 %123
    %125 = vrot.lane.b32.xlu0 %v86, 2
    %v126 = vpop.permute.xlu0 %125
    %127 = vrot.lane.b32.xlu0 %v88, 2
    %v128 = vpop.permute.xlu0 %127
    %129 = vrot.lane.b32.xlu0 %v90, 2
    %v130 = vpop.permute.xlu0 %129
    %131 = vrot.lane.b32.xlu0 %v92, 2
    %v132 = vpop.permute.xlu0 %131
    %133 = vrot.lane.b32.xlu0 %v94, 2
    %v134 = vpop.permute.xlu0 %133
    %135 = vrot.lane.b32.xlu0 %v96, 2
    %v136 = vpop.permute.xlu0 %135
    %153 = vrot.lane.b32.xlu0 %v98, 4
    %v154 = vpop.permute.xlu0 %153
    %155 = vrot.lane.b32.xlu0 %v100, 4
    %v156 = vpop.permute.xlu0 %155
    %157 = vrot.lane.b32.xlu0 %v102, 4
    %v158 = vpop.permute.xlu0 %157
    %159 = vrot.lane.b32.xlu0 %v104, 4
    %v160 = vpop.permute.xlu0 %159
    %161 = vrot.lane.b32.xlu0 %v106, 4
    %v162 = vpop.permute.xlu0 %161
    %163 = vrot.lane.b32.xlu0 %v108, 4
    %v164 = vpop.permute.xlu0 %163
    %165 = vrot.lane.b32.xlu0 %v110, 4
    %v166 = vpop.permute.xlu0 %165
    %167 = vrot.lane.b32.xlu0 %v112, 4
    %v168 = vpop.permute.xlu0 %167
    %vm177 = vcmask 15360
    %v178 = vsel %vm177, %v66, %v122
    %v179 = vsel %vm177, %v68, %v124
    %v180 = vsel %vm177, %v70, %v126
    %v181 = vsel %vm177, %v72, %v128
    %v182 = vsel %vm177, %v74, %v130
    %v183 = vsel %vm177, %v76, %v132
    %v184 = vsel %vm177, %v78, %v134
    %v185 = vsel %vm177, %v80, %v136
    %vm186 = vcmask 31744
    %v187 = vsel %vm186, %v178, %v154
    %v188 = vsel %vm186, %v179, %v156
    %v189 = vsel %vm186, %v180, %v158
    %v190 = vsel %vm186, %v181, %v160
    %v191 = vsel %vm186, %v182, %v162
    %v192 = vsel %vm186, %v183, %v164
    %v193 = vsel %vm186, %v184, %v166
    %v194 = vsel %vm186, %v185, %v168
    %v195 = vld [vmem:[%s1] sm:$0x3f]
    %v196 = vld [vmem:[%s2] sm:$0x1]
    %v198 = vlaneseq
    %v199 = vshrl.u32 %v198, 7
    %v200 = vsub.s32 0, %v199
    %v201 = vrot.slane %v196, %v200
    %vm203 = vcmask 48128
    %v205 = vsel %vm203, %v187, 0
    %v208 = vsel %vm203, %v188, 0
    %v211 = vsel %vm203, %v189, 0
    %v214 = vsel %vm203, %v190, 0
    %v217 = vsel %vm203, %v191, 0
    %v220 = vsel %vm203, %v192, 0
    %v223 = vsel %vm203, %v193, 0
    %v226 = vsel %vm203, %v194, 0
    %vm228 = vcmask 1045504
    %v230 = vsel %vm228, %v195, 0
    %232 = vmatprep.subr.mxu0 0.0
    %233 = vmatpush1.msra.mxu0 %v230
    %234 = vmatprep.subr.mxu0 0.0
    %235 = vmatpush1.msra.mxu0 0.0
    %236 = vmatprep.subr.mxu0 0.0
    %237 = vmatpush1.msra.mxu0 0.0
    %238 = vmatprep.subr.mxu0 0.0
    %239 = vmatpush1.msra.mxu0 0.0
    %240 = vmatprep.subr.mxu0 0.0
    %241 = vmatpush1.msra.mxu0 0.0
    %242 = vmatprep.subr.mxu0 0.0
    %243 = vmatpush1.msra.mxu0 0.0
    %244 = vmatprep.subr.mxu0 0.0
    %245 = vmatpush1.msra.mxu0 0.0
    %246 = vmatprep.subr.mxu0 0.0
    %247 = vmatpush1.msra.mxu0 0.0
    %248 = vmatprep.subr.mxu0 0.0
    %249 = vmatpush1.msra.mxu0 0.0
    %250 = vmatprep.subr.mxu0 0.0
    %251 = vmatpush1.msra.mxu0 0.0
    %252 = vmatprep.subr.mxu0 0.0
    %253 = vmatpush1.msra.mxu0 0.0
    %254 = vmatprep.subr.mxu0 0.0
    %255 = vmatpush1.msra.mxu0 0.0
    %256 = vmatprep.subr.mxu0 0.0
    %257 = vmatpush1.msra.mxu0 0.0
    %258 = vmatprep.subr.mxu0 0.0
    %259 = vmatpush1.msra.mxu0 0.0
    %260 = vmatprep.subr.mxu0 0.0
    %261 = vmatpush1.msra.mxu0 0.0
    %262 = vmatprep.subr.mxu0 0.0
    %263 = vmatpush1.msra.mxu0 0.0
    %264 = vmatprep.subr.mxu0 0.0
    %265 = vmatpush1.msra.mxu0 0.0
    %266 = vmatprep.subr.mxu0 0.0
    %267 = vmatpush1.msra.mxu0 0.0
    %268 = vmatprep.subr.mxu0 0.0
    %269 = vmatpush1.msra.mxu0 0.0
    %270 = vmatprep.subr.mxu0 0.0
    %271 = vmatpush1.msra.mxu0 0.0
    %272 = vmatprep.subr.mxu0 0.0
    %273 = vmatpush1.msra.mxu0 0.0
    %274 = vmatprep.subr.mxu0 0.0
    %275 = vmatpush1.msra.mxu0 0.0
    %276 = vmatprep.subr.mxu0 0.0
    %277 = vmatpush1.msra.mxu0 0.0
    %278 = vmatprep.subr.mxu0 0.0
    %279 = vmatpush1.msra.mxu0 0.0
    %280 = vmatprep.subr.mxu0 0.0
    %281 = vmatpush1.msra.mxu0 0.0
    %282 = vmatprep.subr.mxu0 0.0
    %283 = vmatpush1.msra.mxu0 0.0
    %284 = vmatprep.subr.mxu0 0.0
    %285 = vmatpush1.msra.mxu0 0.0
    %286 = vmatprep.subr.mxu0 0.0
    %287 = vmatpush1.msra.mxu0 0.0
    %288 = vmatprep.subr.mxu0 0.0
    %289 = vmatpush1.msra.mxu0 0.0
    %290 = vmatprep.subr.mxu0 0.0
    %291 = vmatpush1.msra.mxu0 0.0
    %292 = vmatprep.subr.mxu0 0.0
    %293 = vmatpush1.msra.mxu0 0.0
    %294 = vmatprep.subr.mxu0 0.0
    %295 = vmatpush1.msra.mxu0 0.0
    %296 = vmatprep.mubr.f32.mxu0 0.0
    %297 = vmatmul.mubr.f32.gmra.mrb[0].mxu0 %v205
    %v298 = vpop.f32.mrb[0].mxu0
    %v299 = vadd.f32 %v201, %v298
    %v300 = vpop.f32.mrb[0].mxu0
    %301 = vmatprep.mubr.f32.mxu0 0.0
    %302 = vmatmul.mubr.f32.gmra.mrb[0].mxu0 %v208
    %v303 = vpop.f32.mrb[0].mxu0
    %v304 = vadd.f32 %v201, %v303
    %v305 = vpop.f32.mrb[0].mxu0
    %306 = vmatprep.mubr.f32.mxu0 0.0
    %307 = vmatmul.mubr.f32.gmra.mrb[0].mxu0 %v211
    %v308 = vpop.f32.mrb[0].mxu0
    %v309 = vadd.f32 %v201, %v308
    %v310 = vpop.f32.mrb[0].mxu0
    %311 = vmatprep.mubr.f32.mxu0 0.0
    %312 = vmatmul.mubr.f32.gmra.mrb[0].mxu0 %v214
    %v313 = vpop.f32.mrb[0].mxu0
    %v314 = vadd.f32 %v201, %v313
    %v315 = vpop.f32.mrb[0].mxu0
    %316 = vmatprep.mubr.f32.mxu0 0.0
    %317 = vmatmul.mubr.f32.gmra.mrb[0].mxu0 %v217
    %v318 = vpop.f32.mrb[0].mxu0
    %v319 = vadd.f32 %v201, %v318
    %v320 = vpop.f32.mrb[0].mxu0
    %321 = vmatprep.mubr.f32.mxu0 0.0
    %322 = vmatmul.mubr.f32.gmra.mrb[0].mxu0 %v220
    %v323 = vpop.f32.mrb[0].mxu0
    %v324 = vadd.f32 %v201, %v323
    %v325 = vpop.f32.mrb[0].mxu0
    %326 = vmatprep.mubr.f32.mxu0 0.0
    %327 = vmatmul.mubr.f32.gmra.mrb[0].mxu0 %v223
    %v328 = vpop.f32.mrb[0].mxu0
    %v329 = vadd.f32 %v201, %v328
    %v330 = vpop.f32.mrb[0].mxu0
    %331 = vmatprep.mubr.f32.mxu0 0.0
    %332 = vmatmul.mubr.f32.gmra.mrb[0].mxu0 %v226
    %v333 = vpop.f32.mrb[0].mxu0
    %v334 = vadd.f32 %v201, %v333
    %v335 = vpop.f32.mrb[0].mxu0
    %336 = vdwg.mxu0
    %v337 = vmul.f32 %v299, 0.5
    %v338 = vmul.f32 %v304, 0.5
    %v339 = vmul.f32 %v309, 0.5
    %v340 = vmul.f32 %v314, 0.5
    %v341 = vmul.f32 %v319, 0.5
    %v342 = vmul.f32 %v324, 0.5
    %v343 = vmul.f32 %v329, 0.5
    %v344 = vmul.f32 %v334, 0.5
    %v345 = vtanh.pop %v337
    %v346 = vtanh.pop %v338
    %v347 = vtanh.pop %v339
    %v348 = vtanh.pop %v340
    %v349 = vtanh.pop %v341
    %v350 = vtanh.pop %v342
    %v351 = vtanh.pop %v343
    %v352 = vtanh.pop %v344
    %v353 = vmul.f32 %v345, 0.5
    %v354 = vmul.f32 %v346, 0.5
    %v355 = vmul.f32 %v347, 0.5
    %v356 = vmul.f32 %v348, 0.5
    %v357 = vmul.f32 %v349, 0.5
    %v358 = vmul.f32 %v350, 0.5
    %v359 = vmul.f32 %v351, 0.5
    %v360 = vmul.f32 %v352, 0.5
    %v361 = vadd.f32 %v353, 0.5
    %v362 = vadd.f32 %v354, 0.5
    %v363 = vadd.f32 %v355, 0.5
    %v364 = vadd.f32 %v356, 0.5
    %v365 = vadd.f32 %v357, 0.5
    %v366 = vadd.f32 %v358, 0.5
    %v367 = vadd.f32 %v359, 0.5
    %v368 = vadd.f32 %v360, 0.5
    %v369 = vmul.f32 %v299, %v361
    %v370 = vmul.f32 %v304, %v362
    %v371 = vmul.f32 %v309, %v363
    %v372 = vmul.f32 %v314, %v364
    %v373 = vmul.f32 %v319, %v365
    %v374 = vmul.f32 %v324, %v366
    %v375 = vmul.f32 %v329, %v367
    %v376 = vmul.f32 %v334, %v368
    %vm377 = vcmask 122880
    %378 = vst.msk [vmem:[#allocation2] sm:$0x1] %vm377, 0.0
    %379 = vst.msk [vmem:[#allocation2 + $0x28] sm:$0x1] %vm377, 0.0
    %380 = vst.msk [vmem:[#allocation2 + $0x21] sm:$0x1] %vm377, 0.0
    %381 = vst.msk [vmem:[#allocation2 + $0x49] sm:$0x1] %vm377, 0.0
    %vm382 = vcmask 130048
    %383 = vst.msk [vmem:[#allocation2 + $0x1] sm:$0xff] %vm382, %v369
    %384 = vst.msk [vmem:[#allocation2 + $0x9] sm:$0xff] %vm382, %v370
    %385 = vst.msk [vmem:[#allocation2 + $0x11] sm:$0xff] %vm382, %v371
    %386 = vst.msk [vmem:[#allocation2 + $0x19] sm:$0xff] %vm382, %v372
    %387 = vst.msk [vmem:[#allocation2 + $0x29] sm:$0xff] %vm382, %v373
    %388 = vst.msk [vmem:[#allocation2 + $0x31] sm:$0xff] %vm382, %v374
    %389 = vst.msk [vmem:[#allocation2 + $0x39] sm:$0xff] %vm382, %v375
    %390 = vst.msk [vmem:[#allocation2 + $0x41] sm:$0xff] %vm382, %v376
    %v391 = vld [vmem:[#allocation2] sm:$0xff]
    %v392 = vld [vmem:[#allocation2 + $0x8] sm:$0xff]
    %v393 = vld [vmem:[#allocation2 + $0x10] sm:$0xff]
    %v394 = vld [vmem:[#allocation2 + $0x18] sm:$0xff]
    %v395 = vld [vmem:[#allocation2 + $0x28] sm:$0xff]
    %v396 = vld [vmem:[#allocation2 + $0x30] sm:$0xff]
    %v397 = vld [vmem:[#allocation2 + $0x38] sm:$0xff]
    %v398 = vld [vmem:[#allocation2 + $0x40] sm:$0xff]
    %v399 = vld [vmem:[#allocation2 + $0x1] sm:$0xff]
    %v400 = vld [vmem:[#allocation2 + $0x9] sm:$0xff]
    %v401 = vld [vmem:[#allocation2 + $0x11] sm:$0xff]
    %v402 = vld [vmem:[#allocation2 + $0x19] sm:$0xff]
    %v403 = vld [vmem:[#allocation2 + $0x29] sm:$0xff]
    %v404 = vld [vmem:[#allocation2 + $0x31] sm:$0xff]
    %v405 = vld [vmem:[#allocation2 + $0x39] sm:$0xff]
    %v406 = vld [vmem:[#allocation2 + $0x41] sm:$0xff]
    %v407 = vld [vmem:[#allocation2 + $0x2] sm:$0xff]
    %v408 = vld [vmem:[#allocation2 + $0xa] sm:$0xff]
    %v409 = vld [vmem:[#allocation2 + $0x12] sm:$0xff]
    %v410 = vld [vmem:[#allocation2 + $0x1a] sm:$0xff]
    %v411 = vld [vmem:[#allocation2 + $0x2a] sm:$0xff]
    %v412 = vld [vmem:[#allocation2 + $0x32] sm:$0xff]
    %v413 = vld [vmem:[#allocation2 + $0x3a] sm:$0xff]
    %v414 = vld [vmem:[#allocation2 + $0x42] sm:$0xff]
    %423 = vrot.lane.b32.xlu0 %v399, 16
    %v424 = vpop.permute.xlu0 %423
    %425 = vrot.lane.b32.xlu0 %v400, 16
    %v426 = vpop.permute.xlu0 %425
    %427 = vrot.lane.b32.xlu0 %v401, 16
    %v428 = vpop.permute.xlu0 %427
    %429 = vrot.lane.b32.xlu0 %v402, 16
    %v430 = vpop.permute.xlu0 %429
    %431 = vrot.lane.b32.xlu0 %v403, 16
    %v432 = vpop.permute.xlu0 %431
    %433 = vrot.lane.b32.xlu0 %v404, 16
    %v434 = vpop.permute.xlu0 %433
    %435 = vrot.lane.b32.xlu0 %v405, 16
    %v436 = vpop.permute.xlu0 %435
    %437 = vrot.lane.b32.xlu0 %v406, 16
    %v438 = vpop.permute.xlu0 %437
    %455 = vrot.lane.b32.xlu0 %v407, 32
    %v456 = vpop.permute.xlu0 %455
    %457 = vrot.lane.b32.xlu0 %v408, 32
    %v458 = vpop.permute.xlu0 %457
    %459 = vrot.lane.b32.xlu0 %v409, 32
    %v460 = vpop.permute.xlu0 %459
    %461 = vrot.lane.b32.xlu0 %v410, 32
    %v462 = vpop.permute.xlu0 %461
    %463 = vrot.lane.b32.xlu0 %v411, 32
    %v464 = vpop.permute.xlu0 %463
    %465 = vrot.lane.b32.xlu0 %v412, 32
    %v466 = vpop.permute.xlu0 %465
    %467 = vrot.lane.b32.xlu0 %v413, 32
    %v468 = vpop.permute.xlu0 %467
    %469 = vrot.lane.b32.xlu0 %v414, 32
    %v470 = vpop.permute.xlu0 %469
    %v479 = vsel %vm382, %v391, %v424
    %v480 = vsel %vm382, %v392, %v426
    %v481 = vsel %vm382, %v393, %v428
    %v482 = vsel %vm382, %v394, %v430
    %v483 = vsel %vm382, %v395, %v432
    %v484 = vsel %vm382, %v396, %v434
    %v485 = vsel %vm382, %v397, %v436
    %v486 = vsel %vm382, %v398, %v438
    %vm487 = vcmask 261120
    %v488 = vsel %vm487, %v479, %v456
    %v489 = vsel %vm487, %v480, %v458
    %v490 = vsel %vm487, %v481, %v460
    %v491 = vsel %vm487, %v482, %v462
    %v492 = vsel %vm487, %v483, %v464
    %v493 = vsel %vm487, %v484, %v466
    %v494 = vsel %vm487, %v485, %v468
    %v495 = vsel %vm487, %v486, %v470
    %v496 = vld [vmem:[%s3] sm:$0xff]
    %v497 = vld [vmem:[%s3 + $0x8] sm:$0xff]
    %v498 = vld [vmem:[%s3 + $0x10] sm:$0xff]
    %v499 = vld [vmem:[%s3 + $0x18] sm:$0xff]
    %v500 = vld [vmem:[%s3 + $0x20] sm:$0xff]
    %v501 = vld [vmem:[%s3 + $0x28] sm:$0xff]
    %v502 = vld [vmem:[%s4] sm:$0x1]
    %v504 = vlaneseq
    %v505 = vshrl.u32 %v504, 7
    %v506 = vsub.s32 0, %v505
    %v507 = vrot.slane %v502, %v506
    %vm509 = vcmask 392192
    %v511 = vsel %vm509, %v488, 0
    %v514 = vsel %vm509, %v489, 0
    %v517 = vsel %vm509, %v490, 0
    %v520 = vsel %vm509, %v491, 0
    %v523 = vsel %vm509, %v492, 0
    %v526 = vsel %vm509, %v493, 0
    %v529 = vsel %vm509, %v494, 0
    %v532 = vsel %vm509, %v495, 0
    %534 = vmatprep.subr.mxu0 0.0
    %535 = vmatpush1.msra.mxu0 %v496
    %536 = vmatprep.subr.mxu0 0.0
    %537 = vmatpush1.msra.mxu0 %v497
    %538 = vmatprep.subr.mxu0 0.0
    %539 = vmatpush1.msra.mxu0 %v498
    %540 = vmatprep.subr.mxu0 0.0
    %541 = vmatpush1.msra.mxu0 %v499
    %542 = vmatprep.subr.mxu0 0.0
    %543 = vmatpush1.msra.mxu0 %v500
    %544 = vmatprep.subr.mxu0 0.0
    %545 = vmatpush1.msra.mxu0 %v501
    %546 = vmatprep.subr.mxu0 0.0
    %547 = vmatpush1.msra.mxu0 0.0
    %548 = vmatprep.subr.mxu0 0.0
    %549 = vmatpush1.msra.mxu0 0.0
    %550 = vmatprep.subr.mxu0 0.0
    %551 = vmatpush1.msra.mxu0 0.0
    %552 = vmatprep.subr.mxu0 0.0
    %553 = vmatpush1.msra.mxu0 0.0
    %554 = vmatprep.subr.mxu0 0.0
    %555 = vmatpush1.msra.mxu0 0.0
    %556 = vmatprep.subr.mxu0 0.0
    %557 = vmatpush1.msra.mxu0 0.0
    %558 = vmatprep.subr.mxu0 0.0
    %559 = vmatpush1.msra.mxu0 0.0
    %560 = vmatprep.subr.mxu0 0.0
    %561 = vmatpush1.msra.mxu0 0.0
    %562 = vmatprep.subr.mxu0 0.0
    %563 = vmatpush1.msra.mxu0 0.0
    %564 = vmatprep.subr.mxu0 0.0
    %565 = vmatpush1.msra.mxu0 0.0
    %566 = vmatprep.subr.mxu0 0.0
    %567 = vmatpush1.msra.mxu0 0.0
    %568 = vmatprep.subr.mxu0 0.0
    %569 = vmatpush1.msra.mxu0 0.0
    %570 = vmatprep.subr.mxu0 0.0
    %571 = vmatpush1.msra.mxu0 0.0
    %572 = vmatprep.subr.mxu0 0.0
    %573 = vmatpush1.msra.mxu0 0.0
    %574 = vmatprep.subr.mxu0 0.0
    %575 = vmatpush1.msra.mxu0 0.0
    %576 = vmatprep.subr.mxu0 0.0
    %577 = vmatpush1.msra.mxu0 0.0
    %578 = vmatprep.subr.mxu0 0.0
    %579 = vmatpush1.msra.mxu0 0.0
    %580 = vmatprep.subr.mxu0 0.0
    %581 = vmatpush1.msra.mxu0 0.0
    %582 = vmatprep.subr.mxu0 0.0
    %583 = vmatpush1.msra.mxu0 0.0
    %584 = vmatprep.subr.mxu0 0.0
    %585 = vmatpush1.msra.mxu0 0.0
    %586 = vmatprep.subr.mxu0 0.0
    %587 = vmatpush1.msra.mxu0 0.0
    %588 = vmatprep.subr.mxu0 0.0
    %589 = vmatpush1.msra.mxu0 0.0
    %590 = vmatprep.subr.mxu0 0.0
    %591 = vmatpush1.msra.mxu0 0.0
    %592 = vmatprep.subr.mxu0 0.0
    %593 = vmatpush1.msra.mxu0 0.0
    %594 = vmatprep.subr.mxu0 0.0
    %595 = vmatpush1.msra.mxu0 0.0
    %596 = vmatprep.subr.mxu0 0.0
    %597 = vmatpush1.msra.mxu0 0.0
    %598 = vmatprep.mubr.f32.mxu0 0.0
    %599 = vmatmul.mubr.f32.gmra.mrb[0].mxu0 %v511
    %v600 = vpop.f32.mrb[0].mxu0
    %v601 = vadd.f32 %v507, %v600
    %v602 = vpop.f32.mrb[0].mxu0
    %603 = vmatprep.mubr.f32.mxu0 0.0
    %604 = vmatmul.mubr.f32.gmra.mrb[0].mxu0 %v514
    %v605 = vpop.f32.mrb[0].mxu0
    %v606 = vadd.f32 %v507, %v605
    %v607 = vpop.f32.mrb[0].mxu0
    %608 = vmatprep.mubr.f32.mxu0 0.0
    %609 = vmatmul.mubr.f32.gmra.mrb[0].mxu0 %v517
    %v610 = vpop.f32.mrb[0].mxu0
    %v611 = vadd.f32 %v507, %v610
    %v612 = vpop.f32.mrb[0].mxu0
    %613 = vmatprep.mubr.f32.mxu0 0.0
    %614 = vmatmul.mubr.f32.gmra.mrb[0].mxu0 %v520
    %v615 = vpop.f32.mrb[0].mxu0
    %v616 = vadd.f32 %v507, %v615
    %v617 = vpop.f32.mrb[0].mxu0
    %618 = vmatprep.mubr.f32.mxu0 0.0
    %619 = vmatmul.mubr.f32.gmra.mrb[0].mxu0 %v523
    %v620 = vpop.f32.mrb[0].mxu0
    %v621 = vadd.f32 %v507, %v620
    %v622 = vpop.f32.mrb[0].mxu0
    %623 = vmatprep.mubr.f32.mxu0 0.0
    %624 = vmatmul.mubr.f32.gmra.mrb[0].mxu0 %v526
    %v625 = vpop.f32.mrb[0].mxu0
    %v626 = vadd.f32 %v507, %v625
    %v627 = vpop.f32.mrb[0].mxu0
    %628 = vmatprep.mubr.f32.mxu0 0.0
    %629 = vmatmul.mubr.f32.gmra.mrb[0].mxu0 %v529
    %v630 = vpop.f32.mrb[0].mxu0
    %v631 = vadd.f32 %v507, %v630
    %v632 = vpop.f32.mrb[0].mxu0
    %633 = vmatprep.mubr.f32.mxu0 0.0
    %634 = vmatmul.mubr.f32.gmra.mrb[0].mxu0 %v532
    %v635 = vpop.f32.mrb[0].mxu0
    %v636 = vadd.f32 %v507, %v635
    %v637 = vpop.f32.mrb[0].mxu0
    %638 = vdwg.mxu0
    %v639 = vmul.f32 %v601, 0.5
    %v640 = vmul.f32 %v606, 0.5
    %v641 = vmul.f32 %v611, 0.5
    %v642 = vmul.f32 %v616, 0.5
    %v643 = vmul.f32 %v621, 0.5
    %v644 = vmul.f32 %v626, 0.5
    %v645 = vmul.f32 %v631, 0.5
    %v646 = vmul.f32 %v636, 0.5
    %v647 = vtanh.pop %v639
    %v648 = vtanh.pop %v640
    %v649 = vtanh.pop %v641
    %v650 = vtanh.pop %v642
    %v651 = vtanh.pop %v643
    %v652 = vtanh.pop %v644
    %v653 = vtanh.pop %v645
    %v654 = vtanh.pop %v646
    %v655 = vmul.f32 %v647, 0.5
    %v656 = vmul.f32 %v648, 0.5
    %v657 = vmul.f32 %v649, 0.5
    %v658 = vmul.f32 %v650, 0.5
    %v659 = vmul.f32 %v651, 0.5
    %v660 = vmul.f32 %v652, 0.5
    %v661 = vmul.f32 %v653, 0.5
    %v662 = vmul.f32 %v654, 0.5
    %v663 = vadd.f32 %v655, 0.5
    %v664 = vadd.f32 %v656, 0.5
    %v665 = vadd.f32 %v657, 0.5
    %v666 = vadd.f32 %v658, 0.5
    %v667 = vadd.f32 %v659, 0.5
    %v668 = vadd.f32 %v660, 0.5
    %v669 = vadd.f32 %v661, 0.5
    %v670 = vadd.f32 %v662, 0.5
    %v671 = vmul.f32 %v601, %v663
    %v672 = vmul.f32 %v606, %v664
    %v673 = vmul.f32 %v611, %v665
    %v674 = vmul.f32 %v616, %v666
    %v675 = vmul.f32 %v621, %v667
    %v676 = vmul.f32 %v626, %v668
    %v677 = vmul.f32 %v631, %v669
    %v678 = vmul.f32 %v636, %v670
    %679 = vst.msk [vmem:[#allocation3] sm:$0x1] %vm377, 0.0
    %680 = vst.msk [vmem:[#allocation3 + $0x28] sm:$0x1] %vm377, 0.0
    %681 = vst.msk [vmem:[#allocation3 + $0x21] sm:$0x1] %vm377, 0.0
    %682 = vst.msk [vmem:[#allocation3 + $0x49] sm:$0x1] %vm377, 0.0
    %683 = vst.msk [vmem:[#allocation3 + $0x1] sm:$0xff] %vm382, %v671
    %684 = vst.msk [vmem:[#allocation3 + $0x9] sm:$0xff] %vm382, %v672
    %685 = vst.msk [vmem:[#allocation3 + $0x11] sm:$0xff] %vm382, %v673
    %686 = vst.msk [vmem:[#allocation3 + $0x19] sm:$0xff] %vm382, %v674
    %687 = vst.msk [vmem:[#allocation3 + $0x29] sm:$0xff] %vm382, %v675
    %688 = vst.msk [vmem:[#allocation3 + $0x31] sm:$0xff] %vm382, %v676
    %689 = vst.msk [vmem:[#allocation3 + $0x39] sm:$0xff] %vm382, %v677
    %690 = vst.msk [vmem:[#allocation3 + $0x41] sm:$0xff] %vm382, %v678
    %v691 = vld [vmem:[#allocation3] ss:$2 sm:$0xff]
    %s692 = scalar_lea.vmem [#allocation3], 16
    %v693 = vld [vmem:[%s692] ss:$2 sm:$0xff]
    %s694 = scalar_lea.vmem [#allocation3], 40
    %v695 = vld [vmem:[%s694] ss:$2 sm:$0xff]
    %s696 = scalar_lea.vmem [#allocation3], 56
    %v697 = vld [vmem:[%s696] ss:$2 sm:$0xff]
    %s698 = scalar_lea.vmem [#allocation3], 1
    %v699 = vld [vmem:[%s698] ss:$2 sm:$0xff]
    %s700 = scalar_lea.vmem [#allocation3], 17
    %v701 = vld [vmem:[%s700] ss:$2 sm:$0xff]
    %s702 = scalar_lea.vmem [#allocation3], 41
    %v703 = vld [vmem:[%s702] ss:$2 sm:$0xff]
    %s704 = scalar_lea.vmem [#allocation3], 57
    %v705 = vld [vmem:[%s704] ss:$2 sm:$0xff]
    %s706 = scalar_lea.vmem [#allocation3], 2
    %v707 = vld [vmem:[%s706] ss:$2 sm:$0xff]
    %s708 = scalar_lea.vmem [#allocation3], 18
    %v709 = vld [vmem:[%s708] ss:$2 sm:$0xff]
    %s710 = scalar_lea.vmem [#allocation3], 42
    %v711 = vld [vmem:[%s710] ss:$2 sm:$0xff]
    %s712 = scalar_lea.vmem [#allocation3], 58
    %v713 = vld [vmem:[%s712] ss:$2 sm:$0xff]
    %718 = vrot.lane.b32.xlu0 %v699, 16
    %v719 = vpop.permute.xlu0 %718
    %720 = vrot.lane.b32.xlu0 %v701, 16
    %v721 = vpop.permute.xlu0 %720
    %722 = vrot.lane.b32.xlu0 %v703, 16
    %v723 = vpop.permute.xlu0 %722
    %724 = vrot.lane.b32.xlu0 %v705, 16
    %v725 = vpop.permute.xlu0 %724
    %734 = vrot.lane.b32.xlu0 %v707, 32
    %v735 = vpop.permute.xlu0 %734
    %736 = vrot.lane.b32.xlu0 %v709, 32
    %v737 = vpop.permute.xlu0 %736
    %738 = vrot.lane.b32.xlu0 %v711, 32
    %v739 = vpop.permute.xlu0 %738
    %740 = vrot.lane.b32.xlu0 %v713, 32
    %v741 = vpop.permute.xlu0 %740
    %v746 = vsel %vm382, %v691, %v719
    %v747 = vsel %vm382, %v693, %v721
    %v748 = vsel %vm382, %v695, %v723
    %v749 = vsel %vm382, %v697, %v725
    %v750 = vsel %vm487, %v746, %v735
    %v751 = vsel %vm487, %v747, %v737
    %v752 = vsel %vm487, %v748, %v739
    %v753 = vsel %vm487, %v749, %v741
    %v754 = vld [vmem:[%s5] sm:$0xff]
    %v755 = vld [vmem:[%s5 + $0x8] sm:$0xff]
    %v756 = vld [vmem:[%s5 + $0x10] sm:$0xff]
    %v757 = vld [vmem:[%s5 + $0x18] sm:$0xff]
    %v758 = vld [vmem:[%s5 + $0x20] sm:$0xff]
    %v759 = vld [vmem:[%s5 + $0x28] sm:$0xff]
    %v760 = vld [vmem:[%s6] sm:$0x1]
    %v762 = vlaneseq
    %v763 = vshrl.u32 %v762, 7
    %v764 = vsub.s32 0, %v763
    %v765 = vrot.slane %v760, %v764
    %v768 = vsel %vm509, %v750, 0
    %v771 = vsel %vm509, %v751, 0
    %v774 = vsel %vm509, %v752, 0
    %v777 = vsel %vm509, %v753, 0
    %779 = vmatprep.subr.mxu0 0.0
    %780 = vmatpush1.msra.mxu0 %v754
    %781 = vmatprep.subr.mxu0 0.0
    %782 = vmatpush1.msra.mxu0 %v755
    %783 = vmatprep.subr.mxu0 0.0
    %784 = vmatpush1.msra.mxu0 %v756
    %785 = vmatprep.subr.mxu0 0.0
    %786 = vmatpush1.msra.mxu0 %v757
    %787 = vmatprep.subr.mxu0 0.0
    %788 = vmatpush1.msra.mxu0 %v758
    %789 = vmatprep.subr.mxu0 0.0
    %790 = vmatpush1.msra.mxu0 %v759
    %791 = vmatprep.subr.mxu0 0.0
    %792 = vmatpush1.msra.mxu0 0.0
    %793 = vmatprep.subr.mxu0 0.0
    %794 = vmatpush1.msra.mxu0 0.0
    %795 = vmatprep.subr.mxu0 0.0
    %796 = vmatpush1.msra.mxu0 0.0
    %797 = vmatprep.subr.mxu0 0.0
    %798 = vmatpush1.msra.mxu0 0.0
    %799 = vmatprep.subr.mxu0 0.0
    %800 = vmatpush1.msra.mxu0 0.0
    %801 = vmatprep.subr.mxu0 0.0
    %802 = vmatpush1.msra.mxu0 0.0
    %803 = vmatprep.subr.mxu0 0.0
    %804 = vmatpush1.msra.mxu0 0.0
    %805 = vmatprep.subr.mxu0 0.0
    %806 = vmatpush1.msra.mxu0 0.0
    %807 = vmatprep.subr.mxu0 0.0
    %808 = vmatpush1.msra.mxu0 0.0
    %809 = vmatprep.subr.mxu0 0.0
    %810 = vmatpush1.msra.mxu0 0.0
    %811 = vmatprep.subr.mxu0 0.0
    %812 = vmatpush1.msra.mxu0 0.0
    %813 = vmatprep.subr.mxu0 0.0
    %814 = vmatpush1.msra.mxu0 0.0
    %815 = vmatprep.subr.mxu0 0.0
    %816 = vmatpush1.msra.mxu0 0.0
    %817 = vmatprep.subr.mxu0 0.0
    %818 = vmatpush1.msra.mxu0 0.0
    %819 = vmatprep.subr.mxu0 0.0
    %820 = vmatpush1.msra.mxu0 0.0
    %821 = vmatprep.subr.mxu0 0.0
    %822 = vmatpush1.msra.mxu0 0.0
    %823 = vmatprep.subr.mxu0 0.0
    %824 = vmatpush1.msra.mxu0 0.0
    %825 = vmatprep.subr.mxu0 0.0
    %826 = vmatpush1.msra.mxu0 0.0
    %827 = vmatprep.subr.mxu0 0.0
    %828 = vmatpush1.msra.mxu0 0.0
    %829 = vmatprep.subr.mxu0 0.0
    %830 = vmatpush1.msra.mxu0 0.0
    %831 = vmatprep.subr.mxu0 0.0
    %832 = vmatpush1.msra.mxu0 0.0
    %833 = vmatprep.subr.mxu0 0.0
    %834 = vmatpush1.msra.mxu0 0.0
    %835 = vmatprep.subr.mxu0 0.0
    %836 = vmatpush1.msra.mxu0 0.0
    %837 = vmatprep.subr.mxu0 0.0
    %838 = vmatpush1.msra.mxu0 0.0
    %839 = vmatprep.subr.mxu0 0.0
    %840 = vmatpush1.msra.mxu0 0.0
    %841 = vmatprep.subr.mxu0 0.0
    %842 = vmatpush1.msra.mxu0 0.0
    %843 = vmatprep.mubr.f32.mxu0 0.0
    %844 = vmatmul.mubr.f32.gmra.mrb[0].mxu0 %v768
    %v845 = vpop.f32.mrb[0].mxu0
    %v846 = vadd.f32 %v765, %v845
    %v847 = vpop.f32.mrb[0].mxu0
    %848 = vmatprep.mubr.f32.mxu0 0.0
    %849 = vmatmul.mubr.f32.gmra.mrb[0].mxu0 %v771
    %v850 = vpop.f32.mrb[0].mxu0
    %v851 = vadd.f32 %v765, %v850
    %v852 = vpop.f32.mrb[0].mxu0
    %853 = vmatprep.mubr.f32.mxu0 0.0
    %854 = vmatmul.mubr.f32.gmra.mrb[0].mxu0 %v774
    %v855 = vpop.f32.mrb[0].mxu0
    %v856 = vadd.f32 %v765, %v855
    %v857 = vpop.f32.mrb[0].mxu0
    %858 = vmatprep.mubr.f32.mxu0 0.0
    %859 = vmatmul.mubr.f32.gmra.mrb[0].mxu0 %v777
    %v860 = vpop.f32.mrb[0].mxu0
    %v861 = vadd.f32 %v765, %v860
    %v862 = vpop.f32.mrb[0].mxu0
    %863 = vdwg.mxu0
    %v864 = vmul.f32 %v846, 0.5
    %v865 = vmul.f32 %v851, 0.5
    %v866 = vmul.f32 %v856, 0.5
    %v867 = vmul.f32 %v861, 0.5
    %v868 = vtanh.pop %v864
    %v869 = vtanh.pop %v865
    %v870 = vtanh.pop %v866
    %v871 = vtanh.pop %v867
    %v872 = vmul.f32 %v868, 0.5
    %v873 = vmul.f32 %v869, 0.5
    %v874 = vmul.f32 %v870, 0.5
    %v875 = vmul.f32 %v871, 0.5
    %v876 = vadd.f32 %v872, 0.5
    %v877 = vadd.f32 %v873, 0.5
    %v878 = vadd.f32 %v874, 0.5
    %v879 = vadd.f32 %v875, 0.5
    %v880 = vmul.f32 %v846, %v876
    %v881 = vmul.f32 %v851, %v877
    %v882 = vmul.f32 %v856, %v878
    %v883 = vmul.f32 %v861, %v879
    %884 = vst [vmem:[#allocation4] sm:$0x1] 0.0
    %885 = vst [vmem:[#allocation4 + $0x18] sm:$0x1] 0.0
    %886 = vst [vmem:[#allocation4 + $0x11] sm:$0x1] 0.0
    %887 = vst [vmem:[#allocation4 + $0x29] sm:$0x1] 0.0
    %888 = vst [vmem:[#allocation4 + $0x1] sm:$0xff] %v880
    %889 = vst [vmem:[#allocation4 + $0x9] sm:$0xff] %v881
    %890 = vst [vmem:[#allocation4 + $0x19] sm:$0xff] %v882
    %891 = vst [vmem:[#allocation4 + $0x21] sm:$0xff] %v883
    %v892 = vld [vmem:[#allocation4] sm:$0xff]
    %v893 = vld [vmem:[#allocation4 + $0x8] sm:$0xff]
    %v894 = vld [vmem:[#allocation4 + $0x18] sm:$0xff]
    %v895 = vld [vmem:[#allocation4 + $0x20] sm:$0xff]
    %v896 = vld [vmem:[#allocation4 + $0x1] sm:$0xff]
    %v897 = vld [vmem:[#allocation4 + $0x9] sm:$0xff]
    %v898 = vld [vmem:[#allocation4 + $0x19] sm:$0xff]
    %v899 = vld [vmem:[#allocation4 + $0x21] sm:$0xff]
    %v900 = vld [vmem:[#allocation4 + $0x2] sm:$0xff]
    %v901 = vld [vmem:[#allocation4 + $0xa] sm:$0xff]
    %v902 = vld [vmem:[#allocation4 + $0x1a] sm:$0xff]
    %v903 = vld [vmem:[#allocation4 + $0x22] sm:$0xff]
    %v904 = vld [vmem:[#allocation6] sm:$0xff]
    %v905 = vld [vmem:[#allocation6 + $0x8] sm:$0xff]
    %v906 = vld [vmem:[#allocation6 + $0x10] sm:$0xff]
    %v907 = vld [vmem:[#allocation6 + $0x18] sm:$0xff]
    %v908 = vld [vmem:[#allocation6 + $0x20] sm:$0xff]
    %v909 = vld [vmem:[#allocation6 + $0x28] sm:$0xff]
    %v910 = vld [vmem:[#allocation6 + $0x30] sm:$0xff]
    %v911 = vld [vmem:[#allocation6 + $0x38] sm:$0xff]
    %v912 = vld [vmem:[#allocation6 + $0x40] sm:$0xff]
    %v913 = vld [vmem:[#allocation6 + $0x48] sm:$0xff]
    %v914 = vld [vmem:[#allocation6 + $0x50] sm:$0xff]
    %v915 = vld [vmem:[#allocation6 + $0x58] sm:$0xff]
    %v916 = vld [vmem:[#allocation6 + $0x60] sm:$0xff]
    %v917 = vld [vmem:[#allocation6 + $0x68] sm:$0xff]
    %v918 = vld [vmem:[#allocation6 + $0x70] sm:$0xff]
    %v919 = vld [vmem:[#allocation6 + $0x78] sm:$0xff]
    %v920 = vld [vmem:[#allocation6 + $0x80] sm:$0xff]
    %v921 = vld [vmem:[#allocation6 + $0x88] sm:$0xff]
    %v922 = vld [vmem:[#allocation6 + $0x90] sm:$0xff]
    %v923 = vld [vmem:[#allocation6 + $0x98] sm:$0xff]
    %v924 = vld [vmem:[#allocation6 + $0xa0] sm:$0xff]
    %v925 = vld [vmem:[#allocation6 + $0xa8] sm:$0xff]
    %v926 = vld [vmem:[#allocation6 + $0xb0] sm:$0xff]
    %v927 = vld [vmem:[#allocation6 + $0xb8] sm:$0xff]
    %v928 = vld [vmem:[#allocation6 + $0xc0] sm:$0xff]
    %v929 = vld [vmem:[#allocation6 + $0xc8] sm:$0xff]
    %v930 = vld [vmem:[#allocation6 + $0xd0] sm:$0xff]
    %v931 = vld [vmem:[#allocation6 + $0xd8] sm:$0xff]
    %v932 = vld [vmem:[#allocation6 + $0xe0] sm:$0xff]
    %v933 = vld [vmem:[#allocation6 + $0xe8] sm:$0xff]
    %v934 = vld [vmem:[#allocation6 + $0xf0] sm:$0xff]
    %v935 = vld [vmem:[#allocation6 + $0xf8] sm:$0xff]
    %v936 = vld [vmem:[#allocation6 + $0x100] sm:$0xff]
    %v937 = vld [vmem:[#allocation6 + $0x108] sm:$0xff]
    %v938 = vld [vmem:[#allocation6 + $0x110] sm:$0xff]
    %v939 = vld [vmem:[#allocation6 + $0x118] sm:$0xff]
    %v940 = vld [vmem:[#allocation6 + $0x120] sm:$0xff]
    %v941 = vld [vmem:[#allocation6 + $0x128] sm:$0xff]
    %v942 = vld [vmem:[#allocation6 + $0x130] sm:$0xff]
    %v943 = vld [vmem:[#allocation6 + $0x138] sm:$0xff]
    %v944 = vld [vmem:[#allocation6 + $0x140] sm:$0xff]
    %v945 = vld [vmem:[#allocation6 + $0x148] sm:$0xff]
    %v946 = vld [vmem:[#allocation6 + $0x150] sm:$0xff]
    %v947 = vld [vmem:[#allocation6 + $0x158] sm:$0xff]
    %v948 = vld [vmem:[#allocation6 + $0x160] sm:$0xff]
    %v949 = vld [vmem:[#allocation6 + $0x168] sm:$0xff]
    %v950 = vld [vmem:[#allocation6 + $0x170] sm:$0xff]
    %v951 = vld [vmem:[#allocation6 + $0x178] sm:$0xff]
    %v952 = vld [vmem:[%s8] sm:$0x1]
    %v954 = vlaneseq
    %v955 = vshrl.u32 %v954, 7
    %v956 = vsub.s32 0, %v955
    %v957 = vrot.slane %v952, %v956
    %959 = vmatprep.subr.mxu0 0.0
    %960 = vmatpush1.msra.mxu0 %v904
    %961 = vmatprep.subr.mxu0 0.0
    %962 = vmatpush1.msra.mxu0 %v905
    %963 = vmatprep.subr.mxu0 0.0
    %964 = vmatpush1.msra.mxu0 %v906
    %965 = vmatprep.subr.mxu0 0.0
    %966 = vmatpush1.msra.mxu0 %v907
    %967 = vmatprep.subr.mxu0 0.0
    %968 = vmatpush1.msra.mxu0 %v908
    %969 = vmatprep.subr.mxu0 0.0
    %970 = vmatpush1.msra.mxu0 %v909
    %971 = vmatprep.subr.mxu0 0.0
    %972 = vmatpush1.msra.mxu0 %v910
    %973 = vmatprep.subr.mxu0 0.0
    %974 = vmatpush1.msra.mxu0 %v911
    %975 = vmatprep.subr.mxu0 0.0
    %976 = vmatpush1.msra.mxu0 %v912
    %977 = vmatprep.subr.mxu0 0.0
    %978 = vmatpush1.msra.mxu0 %v913
    %979 = vmatprep.subr.mxu0 0.0
    %980 = vmatpush1.msra.mxu0 %v914
    %981 = vmatprep.subr.mxu0 0.0
    %982 = vmatpush1.msra.mxu0 %v915
    %983 = vmatprep.subr.mxu0 0.0
    %984 = vmatpush1.msra.mxu0 %v916
    %985 = vmatprep.subr.mxu0 0.0
    %986 = vmatpush1.msra.mxu0 %v917
    %987 = vmatprep.subr.mxu0 0.0
    %988 = vmatpush1.msra.mxu0 %v918
    %989 = vmatprep.subr.mxu0 0.0
    %990 = vmatpush1.msra.mxu0 %v919
    %991 = vmatprep.subr.mxu0 0.0
    %992 = vmatpush1.msra.mxu0 %v920
    %993 = vmatprep.subr.mxu0 0.0
    %994 = vmatpush1.msra.mxu0 %v921
    %995 = vmatprep.subr.mxu0 0.0
    %996 = vmatpush1.msra.mxu0 %v922
    %997 = vmatprep.subr.mxu0 0.0
    %998 = vmatpush1.msra.mxu0 %v923
    %999 = vmatprep.subr.mxu0 0.0
    %1000 = vmatpush1.msra.mxu0 %v924
    %1001 = vmatprep.subr.mxu0 0.0
    %1002 = vmatpush1.msra.mxu0 %v925
    %1003 = vmatprep.subr.mxu0 0.0
    %1004 = vmatpush1.msra.mxu0 %v926
    %1005 = vmatprep.subr.mxu0 0.0
    %1006 = vmatpush1.msra.mxu0 %v927
    %1007 = vmatprep.subr.mxu0 0.0
    %1008 = vmatpush1.msra.mxu0 %v928
    %1009 = vmatprep.subr.mxu0 0.0
    %1010 = vmatpush1.msra.mxu0 %v929
    %1011 = vmatprep.subr.mxu0 0.0
    %1012 = vmatpush1.msra.mxu0 %v930
    %1013 = vmatprep.subr.mxu0 0.0
    %1014 = vmatpush1.msra.mxu0 %v931
    %1015 = vmatprep.subr.mxu0 0.0
    %1016 = vmatpush1.msra.mxu0 %v932
    %1017 = vmatprep.subr.mxu0 0.0
    %1018 = vmatpush1.msra.mxu0 %v933
    %1019 = vmatprep.subr.mxu0 0.0
    %1020 = vmatpush1.msra.mxu0 %v934
    %1021 = vmatprep.subr.mxu0 0.0
    %1022 = vmatpush1.msra.mxu0 %v935
    %1023 = vmatprep.mubr.f32.mxu0 %v896
    %1024 = vmatmul.mubr.f32.gmra.mrb[0].mxu0 %v892
    %v1025 = vpop.f32.mrb[0].mxu0
    %v1026 = vadd.f32 %v957, %v1025
    %v1027 = vpop.f32.mrb[0].mxu0
    %1028 = vmatprep.mubr.f32.mxu0 %v897
    %1029 = vmatmul.mubr.f32.gmra.mrb[0].mxu0 %v893
    %v1030 = vpop.f32.mrb[0].mxu0
    %v1031 = vadd.f32 %v957, %v1030
    %v1032 = vpop.f32.mrb[0].mxu0
    %1033 = vmatprep.mubr.f32.mxu0 %v898
    %1034 = vmatmul.mubr.f32.gmra.mrb[0].mxu0 %v894
    %v1035 = vpop.f32.mrb[0].mxu0
    %v1036 = vadd.f32 %v957, %v1035
    %v1037 = vpop.f32.mrb[0].mxu0
    %1038 = vmatprep.mubr.f32.mxu0 %v899
    %1039 = vmatmul.mubr.f32.gmra.mrb[0].mxu0 %v895
    %v1040 = vpop.f32.mrb[0].mxu0
    %v1041 = vadd.f32 %v957, %v1040
    %v1042 = vpop.f32.mrb[0].mxu0
    %1043 = vdwg.mxu0
    %1044 = vmatprep.subr.mxu0 0.0
    %1045 = vmatpush1.msra.mxu0 %v936
    %1046 = vmatprep.subr.mxu0 0.0
    %1047 = vmatpush1.msra.mxu0 %v937
    %1048 = vmatprep.subr.mxu0 0.0
    %1049 = vmatpush1.msra.mxu0 %v938
    %1050 = vmatprep.subr.mxu0 0.0
    %1051 = vmatpush1.msra.mxu0 %v939
    %1052 = vmatprep.subr.mxu0 0.0
    %1053 = vmatpush1.msra.mxu0 %v940
    %1054 = vmatprep.subr.mxu0 0.0
    %1055 = vmatpush1.msra.mxu0 %v941
    %1056 = vmatprep.subr.mxu0 0.0
    %1057 = vmatpush1.msra.mxu0 %v942
    %1058 = vmatprep.subr.mxu0 0.0
    %1059 = vmatpush1.msra.mxu0 %v943
    %1060 = vmatprep.subr.mxu0 0.0
    %1061 = vmatpush1.msra.mxu0 %v944
    %1062 = vmatprep.subr.mxu0 0.0
    %1063 = vmatpush1.msra.mxu0 %v945
    %1064 = vmatprep.subr.mxu0 0.0
    %1065 = vmatpush1.msra.mxu0 %v946
    %1066 = vmatprep.subr.mxu0 0.0
    %1067 = vmatpush1.msra.mxu0 %v947
    %1068 = vmatprep.subr.mxu0 0.0
    %1069 = vmatpush1.msra.mxu0 %v948
    %1070 = vmatprep.subr.mxu0 0.0
    %1071 = vmatpush1.msra.mxu0 %v949
    %1072 = vmatprep.subr.mxu0 0.0
    %1073 = vmatpush1.msra.mxu0 %v950
    %1074 = vmatprep.subr.mxu0 0.0
    %1075 = vmatpush1.msra.mxu0 %v951
    %1076 = vmatprep.subr.mxu0 0.0
    %1077 = vmatpush1.msra.mxu0 0.0
    %1078 = vmatprep.subr.mxu0 0.0
    %1079 = vmatpush1.msra.mxu0 0.0
    %1080 = vmatprep.subr.mxu0 0.0
    %1081 = vmatpush1.msra.mxu0 0.0
    %1082 = vmatprep.subr.mxu0 0.0
    %1083 = vmatpush1.msra.mxu0 0.0
    %1084 = vmatprep.subr.mxu0 0.0
    %1085 = vmatpush1.msra.mxu0 0.0
    %1086 = vmatprep.subr.mxu0 0.0
    %1087 = vmatpush1.msra.mxu0 0.0
    %1088 = vmatprep.subr.mxu0 0.0
    %1089 = vmatpush1.msra.mxu0 0.0
    %1090 = vmatprep.subr.mxu0 0.0
    %1091 = vmatpush1.msra.mxu0 0.0
    %1092 = vmatprep.subr.mxu0 0.0
    %1093 = vmatpush1.msra.mxu0 0.0
    %1094 = vmatprep.subr.mxu0 0.0
    %1095 = vmatpush1.msra.mxu0 0.0
    %1096 = vmatprep.subr.mxu0 0.0
    %1097 = vmatpush1.msra.mxu0 0.0
    %1098 = vmatprep.subr.mxu0 0.0
    %1099 = vmatpush1.msra.mxu0 0.0
    %1100 = vmatprep.subr.mxu0 0.0
    %1101 = vmatpush1.msra.mxu0 0.0
    %1102 = vmatprep.subr.mxu0 0.0
    %1103 = vmatpush1.msra.mxu0 0.0
    %1104 = vmatprep.subr.mxu0 0.0
    %1105 = vmatpush1.msra.mxu0 0.0
    %1106 = vmatprep.subr.mxu0 0.0
    %1107 = vmatpush1.msra.mxu0 0.0
    %1108 = vmatprep.mubr.f32.mxu0 0.0
    %1109 = vmatmul.mubr.f32.gmra.mrb[0].mxu0 %v900
    %v1110 = vpop.f32.mrb[0].mxu0
    %v1111 = vadd.f32 %v1026, %v1110
    %v1112 = vpop.f32.mrb[0].mxu0
    %1113 = vmatprep.mubr.f32.mxu0 0.0
    %1114 = vmatmul.mubr.f32.gmra.mrb[0].mxu0 %v901
    %v1115 = vpop.f32.mrb[0].mxu0
    %v1116 = vadd.f32 %v1031, %v1115
    %v1117 = vpop.f32.mrb[0].mxu0
    %1118 = vmatprep.mubr.f32.mxu0 0.0
    %1119 = vmatmul.mubr.f32.gmra.mrb[0].mxu0 %v902
    %v1120 = vpop.f32.mrb[0].mxu0
    %v1121 = vadd.f32 %v1036, %v1120
    %v1122 = vpop.f32.mrb[0].mxu0
    %1123 = vmatprep.mubr.f32.mxu0 0.0
    %1124 = vmatmul.mubr.f32.gmra.mrb[0].mxu0 %v903
    %v1125 = vpop.f32.mrb[0].mxu0
    %v1126 = vadd.f32 %v1041, %v1125
    %v1127 = vpop.f32.mrb[0].mxu0
    %1128 = vdwg.mxu0
    %v1129 = vmul.f32 %v1111, 0.5
    %v1130 = vmul.f32 %v1116, 0.5
    %v1131 = vmul.f32 %v1121, 0.5
    %v1132 = vmul.f32 %v1126, 0.5
    %v1133 = vtanh.pop %v1129
    %v1134 = vtanh.pop %v1130
    %v1135 = vtanh.pop %v1131
    %v1136 = vtanh.pop %v1132
    %v1137 = vmul.f32 %v1133, 0.5
    %v1138 = vmul.f32 %v1134, 0.5
    %v1139 = vmul.f32 %v1135, 0.5
    %v1140 = vmul.f32 %v1136, 0.5
    %v1141 = vadd.f32 %v1137, 0.5
    %v1142 = vadd.f32 %v1138, 0.5
    %v1143 = vadd.f32 %v1139, 0.5
    %v1144 = vadd.f32 %v1140, 0.5
    %v1145 = vmul.f32 %v1111, %v1141
    %v1146 = vmul.f32 %v1116, %v1142
    %v1147 = vmul.f32 %v1121, %v1143
    %v1148 = vmul.f32 %v1126, %v1144
    %1149 = vst [vmem:[#allocation5] sm:$0x1] 0.0
    %1150 = vst [vmem:[#allocation5 + $0x18] sm:$0x1] 0.0
    %1151 = vst [vmem:[#allocation5 + $0x11] sm:$0x1] 0.0
    %1152 = vst [vmem:[#allocation5 + $0x29] sm:$0x1] 0.0
    %1153 = vst [vmem:[#allocation5 + $0x1] sm:$0xff] %v1145
    %1154 = vst [vmem:[#allocation5 + $0x9] sm:$0xff] %v1146
    %1155 = vst [vmem:[#allocation5 + $0x19] sm:$0xff] %v1147
    %1156 = vst [vmem:[#allocation5 + $0x21] sm:$0xff] %v1148
    %v1157 = vld [vmem:[#allocation5] ss:$2 sm:$0xff]
    %s1158 = scalar_lea.vmem [#allocation5], 24
    %v1159 = vld [vmem:[%s1158] ss:$2 sm:$0xff]
    %s1160 = scalar_lea.vmem [#allocation5], 1
    %v1161 = vld [vmem:[%s1160] ss:$2 sm:$0xff]
    %s1162 = scalar_lea.vmem [#allocation5], 25
    %v1163 = vld [vmem:[%s1162] ss:$2 sm:$0xff]
    %s1164 = scalar_lea.vmem [#allocation5], 2
    %v1165 = vld [vmem:[%s1164] ss:$2 sm:$0xff]
    %s1166 = scalar_lea.vmem [#allocation5], 26
    %v1167 = vld [vmem:[%s1166] ss:$2 sm:$0xff]
    %v1168 = vld [vmem:[#allocation8] sm:$0xff]
    %v1169 = vld [vmem:[#allocation8 + $0x8] sm:$0xff]
    %v1170 = vld [vmem:[#allocation8 + $0x10] sm:$0xff]
    %v1171 = vld [vmem:[#allocation8 + $0x18] sm:$0xff]
    %v1172 = vld [vmem:[#allocation8 + $0x20] sm:$0xff]
    %v1173 = vld [vmem:[#allocation8 + $0x28] sm:$0xff]
    %v1174 = vld [vmem:[#allocation8 + $0x30] sm:$0xff]
    %v1175 = vld [vmem:[#allocation8 + $0x38] sm:$0xff]
    %v1176 = vld [vmem:[#allocation8 + $0x40] sm:$0xff]
    %v1177 = vld [vmem:[#allocation8 + $0x48] sm:$0xff]
    %v1178 = vld [vmem:[#allocation8 + $0x50] sm:$0xff]
    %v1179 = vld [vmem:[#allocation8 + $0x58] sm:$0xff]
    %v1180 = vld [vmem:[#allocation8 + $0x60] sm:$0xff]
    %v1181 = vld [vmem:[#allocation8 + $0x68] sm:$0xff]
    %v1182 = vld [vmem:[#allocation8 + $0x70] sm:$0xff]
    %v1183 = vld [vmem:[#allocation8 + $0x78] sm:$0xff]
    %v1184 = vld [vmem:[#allocation8 + $0x80] sm:$0xff]
    %v1185 = vld [vmem:[#allocation8 + $0x88] sm:$0xff]
    %v1186 = vld [vmem:[#allocation8 + $0x90] sm:$0xff]
    %v1187 = vld [vmem:[#allocation8 + $0x98] sm:$0xff]
    %v1188 = vld [vmem:[#allocation8 + $0xa0] sm:$0xff]
    %v1189 = vld [vmem:[#allocation8 + $0xa8] sm:$0xff]
    %v1190 = vld [vmem:[#allocation8 + $0xb0] sm:$0xff]
    %v1191 = vld [vmem:[#allocation8 + $0xb8] sm:$0xff]
    %v1192 = vld [vmem:[#allocation8 + $0xc0] sm:$0xff]
    %v1193 = vld [vmem:[#allocation8 + $0xc8] sm:$0xff]
    %v1194 = vld [vmem:[#allocation8 + $0xd0] sm:$0xff]
    %v1195 = vld [vmem:[#allocation8 + $0xd8] sm:$0xff]
    %v1196 = vld [vmem:[#allocation8 + $0xe0] sm:$0xff]
    %v1197 = vld [vmem:[#allocation8 + $0xe8] sm:$0xff]
    %v1198 = vld [vmem:[#allocation8 + $0xf0] sm:$0xff]
    %v1199 = vld [vmem:[#allocation8 + $0xf8] sm:$0xff]
    %v1200 = vld [vmem:[#allocation8 + $0x100] sm:$0xff]
    %v1201 = vld [vmem:[#allocation8 + $0x108] sm:$0xff]
    %v1202 = vld [vmem:[#allocation8 + $0x110] sm:$0xff]
    %v1203 = vld [vmem:[#allocation8 + $0x118] sm:$0xff]
    %v1204 = vld [vmem:[#allocation8 + $0x120] sm:$0xff]
    %v1205 = vld [vmem:[#allocation8 + $0x128] sm:$0xff]
    %v1206 = vld [vmem:[#allocation8 + $0x130] sm:$0xff]
    %v1207 = vld [vmem:[#allocation8 + $0x138] sm:$0xff]
    %v1208 = vld [vmem:[#allocation8 + $0x140] sm:$0xff]
    %v1209 = vld [vmem:[#allocation8 + $0x148] sm:$0xff]
    %v1210 = vld [vmem:[#allocation8 + $0x150] sm:$0xff]
    %v1211 = vld [vmem:[#allocation8 + $0x158] sm:$0xff]
    %v1212 = vld [vmem:[#allocation8 + $0x160] sm:$0xff]
    %v1213 = vld [vmem:[#allocation8 + $0x168] sm:$0xff]
    %v1214 = vld [vmem:[#allocation8 + $0x170] sm:$0xff]
    %v1215 = vld [vmem:[#allocation8 + $0x178] sm:$0xff]
    %v1216 = vld [vmem:[#allocation8 + $0x180] sm:$0xff]
    %v1217 = vld [vmem:[#allocation8 + $0x188] sm:$0xff]
    %v1218 = vld [vmem:[#allocation8 + $0x190] sm:$0xff]
    %v1219 = vld [vmem:[#allocation8 + $0x198] sm:$0xff]
    %v1220 = vld [vmem:[#allocation8 + $0x1a0] sm:$0xff]
    %v1221 = vld [vmem:[#allocation8 + $0x1a8] sm:$0xff]
    %v1222 = vld [vmem:[#allocation8 + $0x1b0] sm:$0xff]
    %v1223 = vld [vmem:[#allocation8 + $0x1b8] sm:$0xff]
    %v1224 = vld [vmem:[#allocation8 + $0x1c0] sm:$0xff]
    %v1225 = vld [vmem:[#allocation8 + $0x1c8] sm:$0xff]
    %v1226 = vld [vmem:[#allocation8 + $0x1d0] sm:$0xff]
    %v1227 = vld [vmem:[#allocation8 + $0x1d8] sm:$0xff]
    %v1228 = vld [vmem:[#allocation8 + $0x1e0] sm:$0xff]
    %v1229 = vld [vmem:[#allocation8 + $0x1e8] sm:$0xff]
    %v1230 = vld [vmem:[#allocation8 + $0x1f0] sm:$0xff]
    %v1231 = vld [vmem:[#allocation8 + $0x1f8] sm:$0xff]
    %v1232 = vld [vmem:[#allocation8 + $0x200] sm:$0xff]
    %v1233 = vld [vmem:[#allocation8 + $0x208] sm:$0xff]
    %v1234 = vld [vmem:[#allocation8 + $0x210] sm:$0xff]
    %v1235 = vld [vmem:[#allocation8 + $0x218] sm:$0xff]
    %v1236 = vld [vmem:[#allocation8 + $0x220] sm:$0xff]
    %v1237 = vld [vmem:[#allocation8 + $0x228] sm:$0xff]
    %v1238 = vld [vmem:[#allocation8 + $0x230] sm:$0xff]
    %v1239 = vld [vmem:[#allocation8 + $0x238] sm:$0xff]
    %v1240 = vld [vmem:[#allocation8 + $0x240] sm:$0xff]
    %v1241 = vld [vmem:[#allocation8 + $0x248] sm:$0xff]
    %v1242 = vld [vmem:[#allocation8 + $0x250] sm:$0xff]
    %v1243 = vld [vmem:[#allocation8 + $0x258] sm:$0xff]
    %v1244 = vld [vmem:[#allocation8 + $0x260] sm:$0xff]
    %v1245 = vld [vmem:[#allocation8 + $0x268] sm:$0xff]
    %v1246 = vld [vmem:[#allocation8 + $0x270] sm:$0xff]
    %v1247 = vld [vmem:[#allocation8 + $0x278] sm:$0xff]
    %v1248 = vld [vmem:[#allocation8 + $0x280] sm:$0xff]
    %v1249 = vld [vmem:[#allocation8 + $0x288] sm:$0xff]
    %v1250 = vld [vmem:[#allocation8 + $0x290] sm:$0xff]
    %v1251 = vld [vmem:[#allocation8 + $0x298] sm:$0xff]
    %v1252 = vld [vmem:[#allocation8 + $0x2a0] sm:$0xff]
    %v1253 = vld [vmem:[#allocation8 + $0x2a8] sm:$0xff]
    %v1254 = vld [vmem:[#allocation8 + $0x2b0] sm:$0xff]
    %v1255 = vld [vmem:[#allocation8 + $0x2b8] sm:$0xff]
    %v1256 = vld [vmem:[#allocation8 + $0x2c0] sm:$0xff]
    %v1257 = vld [vmem:[#allocation8 + $0x2c8] sm:$0xff]
    %v1258 = vld [vmem:[#allocation8 + $0x2d0] sm:$0xff]
    %v1259 = vld [vmem:[#allocation8 + $0x2d8] sm:$0xff]
    %v1260 = vld [vmem:[#allocation8 + $0x2e0] sm:$0xff]
    %v1261 = vld [vmem:[#allocation8 + $0x2e8] sm:$0xff]
    %v1262 = vld [vmem:[#allocation8 + $0x2f0] sm:$0xff]
    %v1263 = vld [vmem:[#allocation8 + $0x2f8] sm:$0xff]
    %v1264 = vld [vmem:[%s10] sm:$0x3]
    %v1266 = vlaneseq
    %v1267 = vshrl.u32 %v1266, 7
    %v1268 = vsub.s32 0, %v1267
    %v1269 = vrot.slane %v1264, %v1268
    %v1270 = vlaneseq
    %v1271 = vshrl.u32 %v1270, 7
    %v1272 = vsub.s32 1, %v1271
    %v1273 = vrot.slane %v1264, %v1272
    %1276 = vmatprep.subr.mxu0 %v1169
    %1277 = vmatpush1.msra.mxu0 %v1168
    %1278 = vmatprep.subr.mxu0 %v1171
    %1279 = vmatpush1.msra.mxu0 %v1170
    %1280 = vmatprep.subr.mxu0 %v1173
    %1281 = vmatpush1.msra.mxu0 %v1172
    %1282 = vmatprep.subr.mxu0 %v1175
    %1283 = vmatpush1.msra.mxu0 %v1174
    %1284 = vmatprep.subr.mxu0 %v1177
    %1285 = vmatpush1.msra.mxu0 %v1176
    %1286 = vmatprep.subr.mxu0 %v1179
    %1287 = vmatpush1.msra.mxu0 %v1178
    %1288 = vmatprep.subr.mxu0 %v1181
    %1289 = vmatpush1.msra.mxu0 %v1180
    %1290 = vmatprep.subr.mxu0 %v1183
    %1291 = vmatpush1.msra.mxu0 %v1182
    %1292 = vmatprep.subr.mxu0 %v1185
    %1293 = vmatpush1.msra.mxu0 %v1184
    %1294 = vmatprep.subr.mxu0 %v1187
    %1295 = vmatpush1.msra.mxu0 %v1186
    %1296 = vmatprep.subr.mxu0 %v1189
    %1297 = vmatpush1.msra.mxu0 %v1188
    %1298 = vmatprep.subr.mxu0 %v1191
    %1299 = vmatpush1.msra.mxu0 %v1190
    %1300 = vmatprep.subr.mxu0 %v1193
    %1301 = vmatpush1.msra.mxu0 %v1192
    %1302 = vmatprep.subr.mxu0 %v1195
    %1303 = vmatpush1.msra.mxu0 %v1194
    %1304 = vmatprep.subr.mxu0 %v1197
    %1305 = vmatpush1.msra.mxu0 %v1196
    %1306 = vmatprep.subr.mxu0 %v1199
    %1307 = vmatpush1.msra.mxu0 %v1198
    %1308 = vmatprep.subr.mxu0 %v1201
    %1309 = vmatpush1.msra.mxu0 %v1200
    %1310 = vmatprep.subr.mxu0 %v1203
    %1311 = vmatpush1.msra.mxu0 %v1202
    %1312 = vmatprep.subr.mxu0 %v1205
    %1313 = vmatpush1.msra.mxu0 %v1204
    %1314 = vmatprep.subr.mxu0 %v1207
    %1315 = vmatpush1.msra.mxu0 %v1206
    %1316 = vmatprep.subr.mxu0 %v1209
    %1317 = vmatpush1.msra.mxu0 %v1208
    %1318 = vmatprep.subr.mxu0 %v1211
    %1319 = vmatpush1.msra.mxu0 %v1210
    %1320 = vmatprep.subr.mxu0 %v1213
    %1321 = vmatpush1.msra.mxu0 %v1212
    %1322 = vmatprep.subr.mxu0 %v1215
    %1323 = vmatpush1.msra.mxu0 %v1214
    %1324 = vmatprep.subr.mxu0 %v1217
    %1325 = vmatpush1.msra.mxu0 %v1216
    %1326 = vmatprep.subr.mxu0 %v1219
    %1327 = vmatpush1.msra.mxu0 %v1218
    %1328 = vmatprep.subr.mxu0 %v1221
    %1329 = vmatpush1.msra.mxu0 %v1220
    %1330 = vmatprep.subr.mxu0 %v1223
    %1331 = vmatpush1.msra.mxu0 %v1222
    %1332 = vmatprep.subr.mxu0 %v1225
    %1333 = vmatpush1.msra.mxu0 %v1224
    %1334 = vmatprep.subr.mxu0 %v1227
    %1335 = vmatpush1.msra.mxu0 %v1226
    %1336 = vmatprep.subr.mxu0 %v1229
    %1337 = vmatpush1.msra.mxu0 %v1228
    %1338 = vmatprep.subr.mxu0 %v1231
    %1339 = vmatpush1.msra.mxu0 %v1230
    %1340 = vmatprep.mubr.f32.mxu0 %v1161
    %1341 = vmatmul.mubr.f32.gmra.mrb[0].mxu0 %v1157
    %v1342 = vpop.f32.mrb[0].mxu0
    %v1343 = vadd.f32 %v1269, %v1342
    %v1344 = vpop.f32.mrb[0].mxu0
    %v1345 = vadd.f32 %v1273, %v1344
    %1346 = vmatprep.mubr.f32.mxu0 %v1163
    %1347 = vmatmul.mubr.f32.gmra.mrb[0].mxu0 %v1159
    %v1348 = vpop.f32.mrb[0].mxu0
    %v1349 = vadd.f32 %v1269, %v1348
    %v1350 = vpop.f32.mrb[0].mxu0
    %v1351 = vadd.f32 %v1273, %v1350
    %1352 = vdwg.mxu0
    %1353 = vmatprep.subr.mxu0 %v1233
    %1354 = vmatpush1.msra.mxu0 %v1232
    %1355 = vmatprep.subr.mxu0 %v1235
    %1356 = vmatpush1.msra.mxu0 %v1234
    %1357 = vmatprep.subr.mxu0 %v1237
    %1358 = vmatpush1.msra.mxu0 %v1236
    %1359 = vmatprep.subr.mxu0 %v1239
    %1360 = vmatpush1.msra.mxu0 %v1238
    %1361 = vmatprep.subr.mxu0 %v1241
    %1362 = vmatpush1.msra.mxu0 %v1240
    %1363 = vmatprep.subr.mxu0 %v1243
    %1364 = vmatpush1.msra.mxu0 %v1242
    %1365 = vmatprep.subr.mxu0 %v1245
    %1366 = vmatpush1.msra.mxu0 %v1244
    %1367 = vmatprep.subr.mxu0 %v1247
    %1368 = vmatpush1.msra.mxu0 %v1246
    %1369 = vmatprep.subr.mxu0 %v1249
    %1370 = vmatpush1.msra.mxu0 %v1248
    %1371 = vmatprep.subr.mxu0 %v1251
    %1372 = vmatpush1.msra.mxu0 %v1250
    %1373 = vmatprep.subr.mxu0 %v1253
    %1374 = vmatpush1.msra.mxu0 %v1252
    %1375 = vmatprep.subr.mxu0 %v1255
    %1376 = vmatpush1.msra.mxu0 %v1254
    %1377 = vmatprep.subr.mxu0 %v1257
    %1378 = vmatpush1.msra.mxu0 %v1256
    %1379 = vmatprep.subr.mxu0 %v1259
    %1380 = vmatpush1.msra.mxu0 %v1258
    %1381 = vmatprep.subr.mxu0 %v1261
    %1382 = vmatpush1.msra.mxu0 %v1260
    %1383 = vmatprep.subr.mxu0 %v1263
    %1384 = vmatpush1.msra.mxu0 %v1262
    %1385 = vmatprep.subr.mxu0 0.0
    %1386 = vmatpush1.msra.mxu0 0.0
    %1387 = vmatprep.subr.mxu0 0.0
    %1388 = vmatpush1.msra.mxu0 0.0
    %1389 = vmatprep.subr.mxu0 0.0
    %1390 = vmatpush1.msra.mxu0 0.0
    %1391 = vmatprep.subr.mxu0 0.0
    %1392 = vmatpush1.msra.mxu0 0.0
    %1393 = vmatprep.subr.mxu0 0.0
    %1394 = vmatpush1.msra.mxu0 0.0
    %1395 = vmatprep.subr.mxu0 0.0
    %1396 = vmatpush1.msra.mxu0 0.0
    %1397 = vmatprep.subr.mxu0 0.0
    %1398 = vmatpush1.msra.mxu0 0.0
    %1399 = vmatprep.subr.mxu0 0.0
    %1400 = vmatpush1.msra.mxu0 0.0
    %1401 = vmatprep.subr.mxu0 0.0
    %1402 = vmatpush1.msra.mxu0 0.0
    %1403 = vmatprep.subr.mxu0 0.0
    %1404 = vmatpush1.msra.mxu0 0.0
    %1405 = vmatprep.subr.mxu0 0.0
    %1406 = vmatpush1.msra.mxu0 0.0
    %1407 = vmatprep.subr.mxu0 0.0
    %1408 = vmatpush1.msra.mxu0 0.0
    %1409 = vmatprep.subr.mxu0 0.0
    %1410 = vmatpush1.msra.mxu0 0.0
    %1411 = vmatprep.subr.mxu0 0.0
    %1412 = vmatpush1.msra.mxu0 0.0
    %1413 = vmatprep.subr.mxu0 0.0
    %1414 = vmatpush1.msra.mxu0 0.0
    %1415 = vmatprep.subr.mxu0 0.0
    %1416 = vmatpush1.msra.mxu0 0.0
    %1417 = vmatprep.mubr.f32.mxu0 0.0
    %1418 = vmatmul.mubr.f32.gmra.mrb[0].mxu0 %v1165
    %v1419 = vpop.f32.mrb[0].mxu0
    %v1420 = vadd.f32 %v1343, %v1419
    %v1421 = vpop.f32.mrb[0].mxu0
    %v1422 = vadd.f32 %v1345, %v1421
    %1423 = vmatprep.mubr.f32.mxu0 0.0
    %1424 = vmatmul.mubr.f32.gmra.mrb[0].mxu0 %v1167
    %v1425 = vpop.f32.mrb[0].mxu0
    %v1426 = vadd.f32 %v1349, %v1425
    %v1427 = vpop.f32.mrb[0].mxu0
    %v1428 = vadd.f32 %v1351, %v1427
    %1429 = vdwg.mxu0
    %1430 = vxpose.xlu0.b32.start [1/16] %v1420, 128
    %1431 = vxpose.xlu0.b32.cont [2/16] 0.0, 128
    %1432 = vxpose.xlu0.b32.cont [3/16] 0.0, 128
    %1433 = vxpose.xlu0.b32.cont [4/16] 0.0, 128
    %1434 = vxpose.xlu0.b32.cont [5/16] 0.0, 128
    %1435 = vxpose.xlu0.b32.cont [6/16] 0.0, 128
    %1436 = vxpose.xlu0.b32.cont [7/16] 0.0, 128
    %1437 = vxpose.xlu0.b32.cont [8/16] 0.0, 128
    %1438 = vxpose.xlu0.b32.cont [9/16] 0.0, 128
    %1439 = vxpose.xlu0.b32.cont [10/16] 0.0, 128
    %1440 = vxpose.xlu0.b32.cont [11/16] 0.0, 128
    %1441 = vxpose.xlu0.b32.cont [12/16] 0.0, 128
    %1442 = vxpose.xlu0.b32.cont [13/16] 0.0, 128
    %1443 = vxpose.xlu0.b32.cont [14/16] 0.0, 128
    %1444 = vxpose.xlu0.b32.cont [15/16] 0.0, 128
    %1445 = vxpose.xlu0.b32.end [16/16] 0.0, 128
    %v1446 = vpop.trf.xlu0
    %v1447 = vpop.trf.xlu0
    %v1448 = vpop.trf.xlu0
    %v1449 = vpop.trf.xlu0
    %v1450 = vpop.trf.xlu0
    %v1451 = vpop.trf.xlu0
    %v1452 = vpop.trf.xlu0
    %v1453 = vpop.trf.xlu0
    %v1454 = vpop.trf.xlu0
    %v1455 = vpop.trf.xlu0
    %v1456 = vpop.trf.xlu0
    %v1457 = vpop.trf.xlu0
    %v1458 = vpop.trf.xlu0
    %v1459 = vpop.trf.xlu0
    %v1460 = vpop.trf.xlu0
    %v1461 = vpop.trf.xlu0
    %1462 = vxpose.xlu0.b32.start [1/16] %v1422, 128
    %1463 = vxpose.xlu0.b32.cont [2/16] 0.0, 128
    %1464 = vxpose.xlu0.b32.cont [3/16] 0.0, 128
    %1465 = vxpose.xlu0.b32.cont [4/16] 0.0, 128
    %1466 = vxpose.xlu0.b32.cont [5/16] 0.0, 128
    %1467 = vxpose.xlu0.b32.cont [6/16] 0.0, 128
    %1468 = vxpose.xlu0.b32.cont [7/16] 0.0, 128
    %1469 = vxpose.xlu0.b32.cont [8/16] 0.0, 128
    %1470 = vxpose.xlu0.b32.cont [9/16] 0.0, 128
    %1471 = vxpose.xlu0.b32.cont [10/16] 0.0, 128
    %1472 = vxpose.xlu0.b32.cont [11/16] 0.0, 128
    %1473 = vxpose.xlu0.b32.cont [12/16] 0.0, 128
    %1474 = vxpose.xlu0.b32.cont [13/16] 0.0, 128
    %1475 = vxpose.xlu0.b32.cont [14/16] 0.0, 128
    %1476 = vxpose.xlu0.b32.cont [15/16] 0.0, 128
    %1477 = vxpose.xlu0.b32.end [16/16] 0.0, 128
    %v1478 = vpop.trf.xlu0
    %v1479 = vpop.trf.xlu0
    %v1480 = vpop.trf.xlu0
    %v1481 = vpop.trf.xlu0
    %v1482 = vpop.trf.xlu0
    %v1483 = vpop.trf.xlu0
    %v1484 = vpop.trf.xlu0
    %v1485 = vpop.trf.xlu0
    %v1486 = vpop.trf.xlu0
    %v1487 = vpop.trf.xlu0
    %v1488 = vpop.trf.xlu0
    %v1489 = vpop.trf.xlu0
    %v1490 = vpop.trf.xlu0
    %v1491 = vpop.trf.xlu0
    %v1492 = vpop.trf.xlu0
    %v1493 = vpop.trf.xlu0
    %vm1494 = vcmask 64512
    %1495 = vst.msk [vmem:[%s11] sm:$0xff] %vm1494, %v1446
    %1496 = vst.msk [vmem:[%s11 + $0x8] sm:$0xff] %vm1494, %v1447
    %1497 = vst.msk [vmem:[%s11 + $0x10] sm:$0xff] %vm1494, %v1448
    %1498 = vst.msk [vmem:[%s11 + $0x18] sm:$0xff] %vm1494, %v1449
    %1499 = vst.msk [vmem:[%s11 + $0x20] sm:$0xff] %vm1494, %v1450
    %1500 = vst.msk [vmem:[%s11 + $0x28] sm:$0xff] %vm1494, %v1451
    %1501 = vst.msk [vmem:[%s11 + $0x30] sm:$0xff] %vm1494, %v1452
    %1502 = vst.msk [vmem:[%s11 + $0x38] sm:$0xff] %vm1494, %v1453
    %1503 = vst.msk [vmem:[%s11 + $0x40] sm:$0xff] %vm1494, %v1454
    %1504 = vst.msk [vmem:[%s11 + $0x48] sm:$0xff] %vm1494, %v1455
    %1505 = vst.msk [vmem:[%s11 + $0x50] sm:$0xff] %vm1494, %v1456
    %1506 = vst.msk [vmem:[%s11 + $0x58] sm:$0xff] %vm1494, %v1457
    %1507 = vst.msk [vmem:[%s11 + $0x60] sm:$0xff] %vm1494, %v1458
    %1508 = vst.msk [vmem:[%s11 + $0x68] sm:$0xff] %vm1494, %v1459
    %1509 = vst.msk [vmem:[%s11 + $0x70] sm:$0xff] %vm1494, %v1460
    %1510 = vst.msk [vmem:[%s11 + $0x78] sm:$0xff] %vm1494, %v1461
    %1511 = vst.msk [vmem:[%s11 + $0x80] sm:$0xff] %vm1494, %v1478
    %1512 = vst.msk [vmem:[%s11 + $0x88] sm:$0xff] %vm1494, %v1479
    %1513 = vst.msk [vmem:[%s11 + $0x90] sm:$0xff] %vm1494, %v1480
    %1514 = vst.msk [vmem:[%s11 + $0x98] sm:$0xff] %vm1494, %v1481
    %1515 = vst.msk [vmem:[%s11 + $0xa0] sm:$0xff] %vm1494, %v1482
    %1516 = vst.msk [vmem:[%s11 + $0xa8] sm:$0xff] %vm1494, %v1483
    %1517 = vst.msk [vmem:[%s11 + $0xb0] sm:$0xff] %vm1494, %v1484
    %1518 = vst.msk [vmem:[%s11 + $0xb8] sm:$0xff] %vm1494, %v1485
    %1519 = vst.msk [vmem:[%s11 + $0xc0] sm:$0xff] %vm1494, %v1486
    %1520 = vst.msk [vmem:[%s11 + $0xc8] sm:$0xff] %vm1494, %v1487
    %1521 = vst.msk [vmem:[%s11 + $0xd0] sm:$0xff] %vm1494, %v1488
    %1522 = vst.msk [vmem:[%s11 + $0xd8] sm:$0xff] %vm1494, %v1489
    %1523 = vst.msk [vmem:[%s11 + $0xe0] sm:$0xff] %vm1494, %v1490
    %1524 = vst.msk [vmem:[%s11 + $0xe8] sm:$0xff] %vm1494, %v1491
    %1525 = vst.msk [vmem:[%s11 + $0xf0] sm:$0xff] %vm1494, %v1492
    %1526 = vst.msk [vmem:[%s11 + $0xf8] sm:$0xff] %vm1494, %v1493
    %1527 = vxpose.xlu0.b32.start [1/16] %v1426, 128
    %1528 = vxpose.xlu0.b32.cont [2/16] 0.0, 128
    %1529 = vxpose.xlu0.b32.cont [3/16] 0.0, 128
    %1530 = vxpose.xlu0.b32.cont [4/16] 0.0, 128
    %1531 = vxpose.xlu0.b32.cont [5/16] 0.0, 128
    %1532 = vxpose.xlu0.b32.cont [6/16] 0.0, 128
    %1533 = vxpose.xlu0.b32.cont [7/16] 0.0, 128
    %1534 = vxpose.xlu0.b32.cont [8/16] 0.0, 128
    %1535 = vxpose.xlu0.b32.cont [9/16] 0.0, 128
    %1536 = vxpose.xlu0.b32.cont [10/16] 0.0, 128
    %1537 = vxpose.xlu0.b32.cont [11/16] 0.0, 128
    %1538 = vxpose.xlu0.b32.cont [12/16] 0.0, 128
    %1539 = vxpose.xlu0.b32.cont [13/16] 0.0, 128
    %1540 = vxpose.xlu0.b32.cont [14/16] 0.0, 128
    %1541 = vxpose.xlu0.b32.cont [15/16] 0.0, 128
    %1542 = vxpose.xlu0.b32.end [16/16] 0.0, 128
    %v1543 = vpop.trf.xlu0
    %v1544 = vpop.trf.xlu0
    %v1545 = vpop.trf.xlu0
    %v1546 = vpop.trf.xlu0
    %v1547 = vpop.trf.xlu0
    %v1548 = vpop.trf.xlu0
    %v1549 = vpop.trf.xlu0
    %v1550 = vpop.trf.xlu0
    %v1551 = vpop.trf.xlu0
    %v1552 = vpop.trf.xlu0
    %v1553 = vpop.trf.xlu0
    %v1554 = vpop.trf.xlu0
    %v1555 = vpop.trf.xlu0
    %v1556 = vpop.trf.xlu0
    %v1557 = vpop.trf.xlu0
    %v1558 = vpop.trf.xlu0
    %1559 = vxpose.xlu0.b32.start [1/16] %v1428, 128
    %1560 = vxpose.xlu0.b32.cont [2/16] 0.0, 128
    %1561 = vxpose.xlu0.b32.cont [3/16] 0.0, 128
    %1562 = vxpose.xlu0.b32.cont [4/16] 0.0, 128
    %1563 = vxpose.xlu0.b32.cont [5/16] 0.0, 128
    %1564 = vxpose.xlu0.b32.cont [6/16] 0.0, 128
    %1565 = vxpose.xlu0.b32.cont [7/16] 0.0, 128
    %1566 = vxpose.xlu0.b32.cont [8/16] 0.0, 128
    %1567 = vxpose.xlu0.b32.cont [9/16] 0.0, 128
    %1568 = vxpose.xlu0.b32.cont [10/16] 0.0, 128
    %1569 = vxpose.xlu0.b32.cont [11/16] 0.0, 128
    %1570 = vxpose.xlu0.b32.cont [12/16] 0.0, 128
    %1571 = vxpose.xlu0.b32.cont [13/16] 0.0, 128
    %1572 = vxpose.xlu0.b32.cont [14/16] 0.0, 128
    %1573 = vxpose.xlu0.b32.cont [15/16] 0.0, 128
    %1574 = vxpose.xlu0.b32.end [16/16] 0.0, 128
    %v1575 = vpop.trf.xlu0
    %v1576 = vpop.trf.xlu0
    %v1577 = vpop.trf.xlu0
    %v1578 = vpop.trf.xlu0
    %v1579 = vpop.trf.xlu0
    %v1580 = vpop.trf.xlu0
    %v1581 = vpop.trf.xlu0
    %v1582 = vpop.trf.xlu0
    %v1583 = vpop.trf.xlu0
    %v1584 = vpop.trf.xlu0
    %v1585 = vpop.trf.xlu0
    %v1586 = vpop.trf.xlu0
    %v1587 = vpop.trf.xlu0
    %v1588 = vpop.trf.xlu0
    %v1589 = vpop.trf.xlu0
    %v1590 = vpop.trf.xlu0
    %s1591 = scalar_lea.vmem %s11, 256
    %1592 = vst.msk [vmem:[%s1591] sm:$0xff] %vm1494, %v1543
    %1593 = vst.msk [vmem:[%s1591 + $0x8] sm:$0xff] %vm1494, %v1544
    %1594 = vst.msk [vmem:[%s1591 + $0x10] sm:$0xff] %vm1494, %v1545
    %1595 = vst.msk [vmem:[%s1591 + $0x18] sm:$0xff] %vm1494, %v1546
    %1596 = vst.msk [vmem:[%s1591 + $0x20] sm:$0xff] %vm1494, %v1547
    %1597 = vst.msk [vmem:[%s1591 + $0x28] sm:$0xff] %vm1494, %v1548
    %1598 = vst.msk [vmem:[%s1591 + $0x30] sm:$0xff] %vm1494, %v1549
    %1599 = vst.msk [vmem:[%s1591 + $0x38] sm:$0xff] %vm1494, %v1550
    %1600 = vst.msk [vmem:[%s1591 + $0x40] sm:$0xff] %vm1494, %v1551
    %1601 = vst.msk [vmem:[%s1591 + $0x48] sm:$0xff] %vm1494, %v1552
    %1602 = vst.msk [vmem:[%s1591 + $0x50] sm:$0xff] %vm1494, %v1553
    %1603 = vst.msk [vmem:[%s1591 + $0x58] sm:$0xff] %vm1494, %v1554
    %1604 = vst.msk [vmem:[%s1591 + $0x60] sm:$0xff] %vm1494, %v1555
    %1605 = vst.msk [vmem:[%s1591 + $0x68] sm:$0xff] %vm1494, %v1556
    %1606 = vst.msk [vmem:[%s1591 + $0x70] sm:$0xff] %vm1494, %v1557
    %1607 = vst.msk [vmem:[%s1591 + $0x78] sm:$0xff] %vm1494, %v1558
    %1608 = vst.msk [vmem:[%s1591 + $0x80] sm:$0xff] %vm1494, %v1575
    %1609 = vst.msk [vmem:[%s1591 + $0x88] sm:$0xff] %vm1494, %v1576
    %1610 = vst.msk [vmem:[%s1591 + $0x90] sm:$0xff] %vm1494, %v1577
    %1611 = vst.msk [vmem:[%s1591 + $0x98] sm:$0xff] %vm1494, %v1578
    %1612 = vst.msk [vmem:[%s1591 + $0xa0] sm:$0xff] %vm1494, %v1579
    %1613 = vst.msk [vmem:[%s1591 + $0xa8] sm:$0xff] %vm1494, %v1580
    %1614 = vst.msk [vmem:[%s1591 + $0xb0] sm:$0xff] %vm1494, %v1581
    %1615 = vst.msk [vmem:[%s1591 + $0xb8] sm:$0xff] %vm1494, %v1582
    %1616 = vst.msk [vmem:[%s1591 + $0xc0] sm:$0xff] %vm1494, %v1583
    %1617 = vst.msk [vmem:[%s1591 + $0xc8] sm:$0xff] %vm1494, %v1584
    %1618 = vst.msk [vmem:[%s1591 + $0xd0] sm:$0xff] %vm1494, %v1585
    %1619 = vst.msk [vmem:[%s1591 + $0xd8] sm:$0xff] %vm1494, %v1586
    %1620 = vst.msk [vmem:[%s1591 + $0xe0] sm:$0xff] %vm1494, %v1587
    %1621 = vst.msk [vmem:[%s1591 + $0xe8] sm:$0xff] %vm1494, %v1588
    %1622 = vst.msk [vmem:[%s1591 + $0xf0] sm:$0xff] %vm1494, %v1589
    %1623 = vst.msk [vmem:[%s1591 + $0xf8] sm:$0xff] %vm1494, %v1590
    // Predicated region
    $region54: #{tpu_custom_call.1} parent=1 // pred_check
      _
    $region55: #{tpu_custom_call.1} parent=1 // pred_check_branch
      %1625 = sbr.rel (0) target = $region57
    $region56: #{tpu_custom_call.1} parent=1 // pred_region
      _
    $region57: #{tpu_custom_call.1} parent=1 // pred_fallthru
      _
    // Predicated region
    $region58: #{tpu_custom_call.1} parent=1 // pred_check
      _
    $region59: #{tpu_custom_call.1} parent=1 // pred_check_branch
      %1627 = sbr.rel (0) target = $region61
    $region60: #{tpu_custom_call.1} parent=1 // pred_region
      _
    $region61: #{tpu_custom_call.1} parent=1 // pred_fallthru
      _
    %1628 = vsyncpa [#allocation7], 1
    %1629 = vsyncpa [#allocation9], 1

</llo_original>
